<compile_context>
chip_gen: v6e
topology: v6e:2x2x1
jax: 0.10.0
libtpu: 0.0.40
codegen_flags: <defaults>
</compile_context>

<pallas_src>
import functools

import jax
import jax.numpy as jnp
from jax import lax
from jax.experimental import pallas as pl
from jax.experimental.pallas import tpu as pltpu


def _round_up(n: int, m: int) -> int:
    return ((n + m - 1) // m) * m


def _pick_tb(batch: int) -> int:
    """Small block-batch: per-block compute dwarfs the ~0.35us/step pipeline overhead,
    so prefer many grid steps (DMA hiding, small VMEM working set, megacore balance)."""
    for tb in (4, 2, 1):
        if batch % tb == 0 and batch // tb >= 8:
            return tb
    return 1


def _spatial_attention_kernel(x_ref, wqv_ref, wk_ref, wo_ref, y_ref, *,
                              tb, c_pad, l_pad, l_valid, compute_dtype):
    # x_ref block: (tb, C_in, l_pad) channel-major; weights are full (small) arrays.
    wqv = wqv_ref[...]                         # (C_in, 2*c_pad), compute_dtype
    wk = wk_ref[...]                           # (c_pad, C_in),   compute_dtype
    wo = wo_ref[...]                           # (C_out, c_pad),  compute_dtype
    approx = compute_dtype != jnp.float32

    # Static key-padding mask (only materialized when H*W was padded up to a lane tile).
    if l_pad > l_valid:
        key_idx = lax.broadcasted_iota(jnp.int32, (1, l_pad), 1)
        key_mask = key_idx < l_valid           # (1, l_pad) bool
    else:
        key_mask = None

    def one_batch(b):
        x = x_ref[b]                           # (C_in, l_pad) float32
        xc = x.astype(compute_dtype)

        # Fused 1x1 q/v projection: qv[l, d] = sum_c x[c, l] * Wqv[c, d]
        qv = lax.dot_general(
            xc, wqv,
            dimension_numbers=(((0,), (0,)), ((), ())),
            preferred_element_type=jnp.float32)            # (l_pad, 2*c_pad) f32
        q = qv[:, 0 * c_pad:1 * c_pad]                     # (l_pad, c_pad)  lane-aligned
        v = qv[:, 1 * c_pad:2 * c_pad]                     # (l_pad, c_pad)

        # k computed channel-major so the scores contraction is in standard
        # (m,k)x(k,n) orientation — no implicit transpose of the k tile.
        k_cl = lax.dot_general(
            wk, xc,
            dimension_numbers=(((1,), (0,)), ((), ())),
            preferred_element_type=jnp.float32)            # (c_pad, l_pad) f32

        # scores[lq, lk] = q[lq] . k[lk]
        scores = lax.dot_general(
            q.astype(compute_dtype), k_cl.astype(compute_dtype),
            dimension_numbers=(((1,), (0,)), ((), ())),
            preferred_element_type=jnp.float32)            # (l_pad, l_pad) f32

        if key_mask is not None:
            scores = jnp.where(key_mask, scores, -1e30)    # padded keys -> exp()==0

        # softmax over the key axis (== torch.softmax(beta, dim=1)), normalization
        # deferred until after the PV matmul (scales (L, c_pad) instead of (L, L)).
        m = jnp.max(scores, axis=-1, keepdims=True)
        e = jnp.exp(scores - m)
        denom = jnp.sum(e, axis=-1, keepdims=True)         # (l_pad, 1)

        av = jnp.dot(e.astype(compute_dtype), v.astype(compute_dtype),
                     preferred_element_type=jnp.float32)   # (l_pad, c_pad) f32
        av = av * pl.reciprocal(denom, approx=approx)

        # 1x1 conv_out straight into channel-major layout:
        # out[co, l] = sum_cv Wo[co, cv] * av[l, cv]
        out = lax.dot_general(
            wo, av.astype(compute_dtype),
            dimension_numbers=(((1,), (1,)), ((), ())),
            preferred_element_type=jnp.float32)            # (C_out, l_pad) f32

        # Residual add in f32; lane-dense store (l_pad % 128 == 0 by construction).
        y_ref[b] = (x.astype(jnp.float32) + out).astype(y_ref.dtype)

    if tb == 1:
        one_batch(0)
    else:
        # fori_loop (not a Python unroll) bounds per-iteration live ranges so the big
        # intermediates are reused rather than replicated tb times.
        def body(b, carry):
            one_batch(b)
            return carry
        lax.fori_loop(0, tb, body, 0, unroll=True)


def spatial_attention_pallas(x_nchw, wq, wk, wv, wo, *, tb=None,
                             compute_dtype=jnp.bfloat16):
    """x_nchw: (B, C_in, H, W); w*: PyTorch conv weights (out, in, 1, 1), bias-free.

    compute_dtype=jnp.bfloat16 (default): bf16 MXU inputs, f32 accumulation/softmax.
    compute_dtype=jnp.float32: strict reference mode.
    """
    B, C_in, H, W = x_nchw.shape
    L = H * W
    C_qk = wq.shape[0]
    C_v = wv.shape[0]
    C_out = wo.shape[0]
    assert wk.shape[0] == C_qk and wo.shape[1] == C_v
    assert C_out == C_in, "residual x + out requires in_channels == out_channels"

    # Pad q/k/v channel width to a 128-lane tile (zero weight columns/rows are exactly
    # neutral), and pad L to a lane tile so stores are never masked vst.msk.
    c_pad = _round_up(max(C_qk, C_v, 1), 128)
    l_pad = _round_up(L, 128)

    def seg(w, width):  # (out, in, 1, 1) -> (C_in, width), zero-padded, for x^T @ W
        mat = w[:, :, 0, 0].T.astype(compute_dtype)
        return jnp.pad(mat, ((0, 0), (0, width - mat.shape[1])))

    w_qv = jnp.concatenate([seg(wq, c_pad), seg(wv, c_pad)], axis=1)   # (C_in, 2*c_pad)
    w_k = jnp.pad(wk[:, :, 0, 0].astype(compute_dtype),
                  ((0, c_pad - C_qk), (0, 0)))                         # (c_pad, C_in)
    w_out = jnp.pad(wo[:, :, 0, 0].astype(compute_dtype),
                    ((0, 0), (0, c_pad - C_v)))                        # (C_out, c_pad)

    if tb is None:
        tb = _pick_tb(B)
    assert B % tb == 0, "tb must divide the batch size"

    # NCHW -> (B, C, L): free reshape, no HBM transpose round trip.
    x_bcl = x_nchw.reshape(B, C_in, L)
    if l_pad != L:
        x_bcl = jnp.pad(x_bcl, ((0, 0), (0, 0), (0, l_pad - L)))

    kernel = functools.partial(_spatial_attention_kernel, tb=tb, c_pad=c_pad,
                               l_pad=l_pad, l_valid=L, compute_dtype=compute_dtype)

    itemsize = jnp.dtype(compute_dtype).itemsize
    flops = 2 * B * (l_pad * C_in * 2 * c_pad          # q/v projection
                     + c_pad * C_in * l_pad            # k projection
                     + 2 * l_pad * l_pad * c_pad       # scores + attn@v
                     + C_out * c_pad * l_pad)          # conv_out
    cost = pl.CostEstimate(
        flops=flops,
        transcendentals=B * l_pad * l_pad,
        bytes_accessed=(x_bcl.size + B * C_out * l_pad) * 4
                       + (w_qv.size + w_k.size + w_out.size) * itemsize)

    y_bcl = pl.pallas_call(
        kernel,
        out_shape=jax.ShapeDtypeStruct((B, C_out, l_pad), x_nchw.dtype),
        grid_spec=pltpu.PrefetchScalarGridSpec(
            num_scalar_prefetch=0,
            grid=(B // tb,),
            in_specs=[
                pl.BlockSpec((tb, C_in, l_pad), lambda i: (i, 0, 0)),
                pl.BlockSpec(w_qv.shape, lambda i: (0, 0)),
                pl.BlockSpec(w_k.shape, lambda i: (0, 0)),
                pl.BlockSpec(w_out.shape, lambda i: (0, 0)),
            ],
            out_specs=pl.BlockSpec((tb, C_out, l_pad), lambda i: (i, 0, 0)),
        ),
        compiler_params=pltpu.CompilerParams(
            dimension_semantics=("parallel",),
            vmem_limit_bytes=32 * 1024 * 1024),
        cost_estimate=cost,
    )(x_bcl, w_qv, w_k, w_out)

    if l_pad != L:
        y_bcl = y_bcl[:, :, :L]
    # (B, C, L) -> NCHW: free reshape.
    return y_bcl.reshape(B, C_out, H, W)


def _reference(x_nchw, wq, wk, wv, wo):
    """Pure-JAX reference mirroring the PyTorch forward exactly."""
    def conv1x1(x, w):  # x: (B,C,H,W), w: (O,C,1,1)
        return jnp.einsum('bchw,oc->bohw', x, w[:, :, 0, 0])
    q = conv1x1(x_nchw, wq)
    k = conv1x1(x_nchw, wk)
    v = conv1x1(x_nchw, wv)
    B, Cq, H, W = q.shape
    kf = k.reshape(B, Cq, -1)
    vf = v.reshape(B, v.shape[1], -1)
    beta = jnp.einsum('bchw,bcL->bLhw', q, kf)
    beta = jax.nn.softmax(beta, axis=1)
    out = jnp.einsum('bLhw,bcL->bchw', beta, vf)
    out = conv1x1(out, wo)
    return x_nchw + out


def _make_case(key, B, C_in, H, W, out_channels, ratio_kq, ratio_v):
    C_qk = out_channels // ratio_kq
    C_v = out_channels // ratio_v
    kx, kq, kk, kv, ko = jax.random.split(key, 5)
    x = jax.random.normal(kx, (B, C_in, H, W), dtype=jnp.float32)
    # Deterministic synthetic conv weights (PyTorch layout: (out, in, 1, 1)).
    wq = 0.1 * jax.random.normal(kq, (C_qk, C_in, 1, 1), dtype=jnp.float32)
    wk = 0.1 * jax.random.normal(kk, (C_qk, C_in, 1, 1), dtype=jnp.float32)
    wv = 0.1 * jax.random.normal(kv, (C_v, C_in, 1, 1), dtype=jnp.float32)
    wo = 0.1 * jax.random.normal(ko, (out_channels, C_v, 1, 1), dtype=jnp.float32)
    return x, wq, wk, wv, wo


if __name__ == "__main__":
    key = jax.random.PRNGKey(0)
    k1, k2 = jax.random.split(key)

    # Case 1: H=W=16 -> L=256 (already lane-dense, no spatial padding path).
    x, wq, wk, wv, wo = _make_case(k1, 2, 32, 16, 16, 32, 4, 4)
    y_ref = jax.block_until_ready(_reference(x, wq, wk, wv, wo))

    # Default bf16-MXU path (f32 accumulation + f32 softmax): loose tolerance.
    y_bf16 = jax.block_until_ready(spatial_attention_pallas(x, wq, wk, wv, wo))
    assert y_bf16.shape == x.shape
    assert jnp.allclose(y_bf16, y_ref, atol=5e-2, rtol=5e-2), "bf16 mismatch vs reference"

    # Strict f32 reference mode.
    y_f32 = jax.block_until_ready(
        spatial_attention_pallas(x, wq, wk, wv, wo, compute_dtype=jnp.float32))
    assert jnp.allclose(y_f32, y_ref, atol=1e-5, rtol=1e-5), "f32 mismatch vs reference"

    # Case 2: H=W=8 -> L=64, padded to 128 lanes with key masking in-kernel.
    x2, wq2, wk2, wv2, wo2 = _make_case(k2, 2, 32, 8, 8, 32, 4, 4)
    y_ref2 = jax.block_until_ready(_reference(x2, wq2, wk2, wv2, wo2))
    y2_f32 = jax.block_until_ready(
        spatial_attention_pallas(x2, wq2, wk2, wv2, wo2, compute_dtype=jnp.float32))
    assert jnp.allclose(y2_f32, y_ref2, atol=1e-5, rtol=1e-5), "padded-L f32 mismatch"
    y2_bf16 = jax.block_until_ready(spatial_attention_pallas(x2, wq2, wk2, wv2, wo2))
    assert jnp.allclose(y2_bf16, y_ref2, atol=5e-2, rtol=5e-2), "padded-L bf16 mismatch"

    print("KERNEL_OK")
</pallas_src>

<mosaic_0001>
module attributes {stable_mosaic.version = 11 : i64} {
  func.func @_spatial_attention_kernel(%arg0: i32, %arg1: memref<1x32x256xf32, #tpu.memory_space<vmem>>, %arg2: memref<32x256xbf16, #tpu.memory_space<vmem>>, %arg3: memref<128x32xbf16, #tpu.memory_space<vmem>>, %arg4: memref<32x128xbf16, #tpu.memory_space<vmem>>, %arg5: memref<1x32x256xf32, #tpu.memory_space<vmem>>) attributes {dimension_semantics = [#tpu.dimension_semantics<parallel>], iteration_bounds = array<i64: 2>, scalar_prefetch = 0 : i64, scratch_operands = 0 : i64, tpu.core_type = #tpu.core_type<tc>, window_params = [{transform_indices = @transform_0, window_bounds = array<i64: 1, 32, 256>}, {pipeline_mode = #tpu.pipeline_mode<synchronous>, transform_indices = @transform_1, window_bounds = array<i64: 32, 256>}, {pipeline_mode = #tpu.pipeline_mode<synchronous>, transform_indices = @transform_2, window_bounds = array<i64: 128, 32>}, {pipeline_mode = #tpu.pipeline_mode<synchronous>, transform_indices = @transform_3, window_bounds = array<i64: 32, 128>}, {transform_indices = @transform_4, window_bounds = array<i64: 1, 32, 256>}]} {
    %c0 = arith.constant 0 : index
    %c0_0 = arith.constant 0 : index
    %0 = vector.load %arg2[%c0, %c0_0] : memref<32x256xbf16, #tpu.memory_space<vmem>>, vector<32x256xbf16>
    %c0_1 = arith.constant 0 : index
    %c0_2 = arith.constant 0 : index
    %1 = vector.load %arg3[%c0_1, %c0_2] : memref<128x32xbf16, #tpu.memory_space<vmem>>, vector<128x32xbf16>
    %c0_3 = arith.constant 0 : index
    %c0_4 = arith.constant 0 : index
    %2 = vector.load %arg4[%c0_3, %c0_4] : memref<32x128xbf16, #tpu.memory_space<vmem>>, vector<32x128xbf16>
    %c0_5 = arith.constant 0 : index
    %c0_6 = arith.constant 0 : index
    %c0_7 = arith.constant 0 : index
    %3 = vector.load %arg1[%c0_5, %c0_6, %c0_7] : memref<1x32x256xf32, #tpu.memory_space<vmem>>, vector<1x32x256xf32>
    %4 = vector.shape_cast %3 : vector<1x32x256xf32> to vector<32x256xf32>
    %5 = arith.truncf %4 : vector<32x256xf32> to vector<32x256xbf16>
    %cst = arith.constant dense<0.000000e+00> : vector<256x256xf32>
    %6 = tpu.matmul %5, %0, %cst {dimension_numbers = #tpu.dot_dimension_numbers<[0], [0], [1], [1], [0, 1, 1, 1], [], []>} : vector<32x256xbf16>, vector<32x256xbf16>, vector<256x256xf32> -> vector<256x256xf32>
    %7 = vector.extract_strided_slice %6 {offsets = [0, 0], sizes = [256, 128], strides = [1, 1]} : vector<256x256xf32> to vector<256x128xf32>
    %8 = vector.extract_strided_slice %6 {offsets = [0, 128], sizes = [256, 128], strides = [1, 1]} : vector<256x256xf32> to vector<256x128xf32>
    %cst_8 = arith.constant dense<0.000000e+00> : vector<128x256xf32>
    %9 = tpu.matmul %1, %5, %cst_8 {dimension_numbers = #tpu.dot_dimension_numbers<[1], [0], [0], [1], [0, 0, 1, 1], [], []>} : vector<128x32xbf16>, vector<32x256xbf16>, vector<128x256xf32> -> vector<128x256xf32>
    %10 = arith.truncf %7 : vector<256x128xf32> to vector<256x128xbf16>
    %11 = arith.truncf %9 : vector<128x256xf32> to vector<128x256xbf16>
    %cst_9 = arith.constant dense<0.000000e+00> : vector<256x256xf32>
    %12 = tpu.matmul %10, %11, %cst_9 {dimension_numbers = #tpu.dot_dimension_numbers<[1], [0], [0], [1], [0, 0, 1, 1], [], []>} : vector<256x128xbf16>, vector<128x256xbf16>, vector<256x256xf32> -> vector<256x256xf32>
    %cst_10 = arith.constant dense<0xFF800000> : vector<256xf32>
    %13 = vector.multi_reduction <maximumf>, %12, %cst_10 [1] : vector<256x256xf32> to vector<256xf32>
    %14 = vector.shape_cast %13 : vector<256xf32> to vector<256x1xf32>
    %15 = vector.broadcast %14 : vector<256x1xf32> to vector<256x256xf32>
    %16 = arith.subf %12, %15 : vector<256x256xf32>
    %17 = math.exp %16 : vector<256x256xf32>
    %cst_11 = arith.constant dense<0.000000e+00> : vector<256xf32>
    %18 = vector.multi_reduction <add>, %17, %cst_11 [1] : vector<256x256xf32> to vector<256xf32>
    %19 = vector.shape_cast %18 : vector<256xf32> to vector<256x1xf32>
    %20 = arith.truncf %17 : vector<256x256xf32> to vector<256x256xbf16>
    %21 = arith.truncf %8 : vector<256x128xf32> to vector<256x128xbf16>
    %cst_12 = arith.constant dense<0.000000e+00> : vector<256x128xf32>
    %22 = tpu.matmul %20, %21, %cst_12 {dimension_numbers = #tpu.dot_dimension_numbers<[1], [0], [0], [1], [0, 0, 1, 1], [], []>} : vector<256x256xbf16>, vector<256x128xbf16>, vector<256x128xf32> -> vector<256x128xf32>
    %23 = tpu.reciprocal %19 {approx = true} : vector<256x1xf32> -> vector<256x1xf32>
    %24 = vector.broadcast %23 : vector<256x1xf32> to vector<256x128xf32>
    %25 = arith.mulf %22, %24 : vector<256x128xf32>
    %26 = arith.truncf %25 : vector<256x128xf32> to vector<256x128xbf16>
    %cst_13 = arith.constant dense<0.000000e+00> : vector<32x256xf32>
    %27 = tpu.matmul %2, %26, %cst_13 {dimension_numbers = #tpu.dot_dimension_numbers<[1], [1], [0], [0], [0, 0, 1, 0], [], []>} : vector<32x128xbf16>, vector<256x128xbf16>, vector<32x256xf32> -> vector<32x256xf32>
    %28 = arith.addf %4, %27 : vector<32x256xf32>
    %c0_14 = arith.constant 0 : index
    %c0_15 = arith.constant 0 : index
    %c0_16 = arith.constant 0 : index
    %29 = vector.load %arg5[%c0_14, %c0_15, %c0_16] : memref<1x32x256xf32, #tpu.memory_space<vmem>>, vector<1x32x256xf32>
    %30 = vector.shape_cast %29 : vector<1x32x256xf32> to vector<32x256xf32>
    %31 = vector.shape_cast %28 : vector<32x256xf32> to vector<1x32x256xf32>
    tpu.vector_store %arg5[%c0_14, %c0_15, %c0_16], %31 {strides = array<i32>} : memref<1x32x256xf32, #tpu.memory_space<vmem>>, vector<1x32x256xf32>,
    return
  }
  func.func @transform_0(%arg0: i32) -> (i32, i32, i32) {
    %c0_i32 = arith.constant 0 : i32
    %c0_i32_0 = arith.constant 0 : i32
    %c0_i32_1 = arith.constant 0 : i32
    return %arg0, %c0_i32, %c0_i32_0 : i32, i32, i32
  }
  func.func @transform_1(%arg0: i32) -> (i32, i32) {
    %c0_i32 = arith.constant 0 : i32
    %c0_i32_0 = arith.constant 0 : i32
    %c0_i32_1 = arith.constant 0 : i32
    return %c0_i32, %c0_i32_0 : i32, i32
  }
  func.func @transform_2(%arg0: i32) -> (i32, i32) {
    %c0_i32 = arith.constant 0 : i32
    %c0_i32_0 = arith.constant 0 : i32
    %c0_i32_1 = arith.constant 0 : i32
    return %c0_i32, %c0_i32_0 : i32, i32
  }
  func.func @transform_3(%arg0: i32) -> (i32, i32) {
    %c0_i32 = arith.constant 0 : i32
    %c0_i32_0 = arith.constant 0 : i32
    %c0_i32_1 = arith.constant 0 : i32
    return %c0_i32, %c0_i32_0 : i32, i32
  }
  func.func @transform_4(%arg0: i32) -> (i32, i32, i32) {
    %c0_i32 = arith.constant 0 : i32
    %c0_i32_0 = arith.constant 0 : i32
    %c0_i32_1 = arith.constant 0 : i32
    return %arg0, %c0_i32, %c0_i32_0 : i32, i32, i32
  }
}

</mosaic_0001>

<llo_original>
// kernel: tpu_custom_call.1
$region0: #{tpu_custom_call.1}
  #allocation0 [shape = 'u32[]', space=smem, size = 0x4, offset = 0x4, fixed_abs, tag = 'smem constant byte address 0x4 - core index']
  #allocation1 [shape = 'u32[144,128]{1,0:T(1,128)}', space=vmem, size = 0x12000, scoped, tag = 'internal scratch']
  %s0 = inlined_call_operand.hbm [shape: f32[2,32,256], index: 0, kind: input, shape index: {}]
  %s1 = inlined_call_operand.vmem [shape: bf16[32,256], index: 1, kind: input, shape index: {}]
  %s2 = inlined_call_operand.vmem [shape: bf16[128,32], index: 2, kind: input, shape index: {}]
  %s3 = inlined_call_operand.vmem [shape: bf16[32,128], index: 3, kind: input, shape index: {}]
  %s4 = inlined_call_operand.hbm [shape: f32[2,32,256], index: 4, kind: output, shape index: {}]
  %s5 = sld [smem:[#allocation0]]
  $region53: #{tpu_custom_call.1} parent=0
    _
  %s7 = ssub.s32 1, %s5
  %s8 = scalar_select 0, %s7, %s5
  $region1: #{tpu_custom_call.1} parent=0
    #allocation2 [shape = 'u8[65536]{0}', space=vmem, size = 0x10000, scoped, tag = 'input window, operand 0']
    #allocation3 [shape = 's32[2]{0}', space=sflag, size = 0x8, scoped, tag = 'scoped memory for tpu_custom_call.1']
    #allocation4 [shape = 's32[2]{0}', space=sflag, size = 0x8, scoped, tag = 'scoped memory for tpu_custom_call.1']
    #allocation5 [shape = 'u8[65536]{0}', space=vmem, size = 0x10000, scoped, tag = 'output window, operand 0']
    %9 = vsyncpa [#allocation3], 0
    %s10 = scalar_lea.sflag [#allocation3], 1
    %11 = vsyncpa %s10, 0
    %12 = vsyncpa [#allocation4], 0
    %s13 = scalar_lea.sflag [#allocation4], 1
    %14 = vsyncpa %s13, 0
    loop: start=0, step=1, limit=4
    $region2: #{tpu_custom_call.1} parent=1 // loop_pre_header
      _
    $region3: #{tpu_custom_call.1} parent=1 // loop_header
      %s16 = sphi 0, %s20
      %p17 = scmp.ge.s32.totalorder %s16, 4
      %s26 = sphi 0, %s28
      %s29 = sphi 0, %s26
      %s30 = sphi 0, %s29
      %s46 = sphi 0, %s30
      %s50 = sphi 0, %s50
      %s52 = sphi 0, %s50
      %s53 = sphi 0, %s52
      %s67 = sphi 0, %s53
      %s71 = sphi 0, %s71
      %s73 = sphi 0, %s71
      %s74 = sphi 0, %s73
      %s88 = sphi 0, %s74
      %s92 = sphi 0, %s92
      %s94 = sphi 0, %s92
      %s95 = sphi 0, %s94
      %s109 = sphi 0, %s95
      %s115 = sphi 0, %s117
      %s118 = sphi 0, %s115
      %s119 = sphi 0, %s118
      %s135 = sphi 0, %s119
    $region4: #{tpu_custom_call.1} parent=1 // loop_header_branch
      %19 = sbr.rel (%p17) target = $region8
    $region5: #{tpu_custom_call.1} parent=1 // loop_body
      %s21 = ssub.s32 %s16, 1
      %s22 = ssub.s32 %s16, 2
      %s23 = sadd.s32 %s16, 1
      %s24 = ssub.s32 %s16, %s23
      %p25 = scmp.eq.s32.totalorder %s24, 0
      %s27 = sadd.s32 %s26, 1
      %s28 = scalar_select %p25, %s26, %s27
      %p31 = pneg %p25
      %p32 = scmp.eq.s32.totalorder %s16, 1
      %p33 = por %p31, %p32
      %p34 = scmp.ne.s32.totalorder %s26, %s29
      %p35 = scmp.eq.s32.totalorder %s16, 0
      %p36 = por %p34, %p35
      %p37 = scmp.ne.s32.totalorder %s26, %s29
      %p38 = scmp.eq.s32.totalorder %s21, 1
      %p39 = por %p37, %p38
      %p40 = scmp.ne.s32.totalorder %s29, %s30
      %p41 = scmp.eq.s32.totalorder %s21, 0
      %p42 = por %p40, %p41
      %p43 = scmp.ne.s32.totalorder %s29, %s30
      %p44 = scmp.eq.s32.totalorder %s22, 1
      %p45 = por %p43, %p44
      %p47 = scmp.ne.s32.totalorder %s30, %s46
      %p48 = scmp.eq.s32.totalorder %s22, 0
      %p49 = por %p47, %p48
      %s51 = sadd.s32 %s50, 1
      %p54 = scmp.eq.s32.totalorder %s16, 1
      %p55 = scmp.ne.s32.totalorder %s50, %s52
      %p56 = scmp.eq.s32.totalorder %s16, 0
      %p57 = por %p55, %p56
      %p58 = scmp.ne.s32.totalorder %s50, %s52
      %p59 = scmp.eq.s32.totalorder %s21, 1
      %p60 = por %p58, %p59
      %p61 = scmp.ne.s32.totalorder %s52, %s53
      %p62 = scmp.eq.s32.totalorder %s21, 0
      %p63 = por %p61, %p62
      %p64 = scmp.ne.s32.totalorder %s52, %s53
      %p65 = scmp.eq.s32.totalorder %s22, 1
      %p66 = por %p64, %p65
      %p68 = scmp.ne.s32.totalorder %s53, %s67
      %p69 = scmp.eq.s32.totalorder %s22, 0
      %p70 = por %p68, %p69
      %s72 = sadd.s32 %s71, 1
      %p75 = scmp.eq.s32.totalorder %s16, 1
      %p76 = scmp.ne.s32.totalorder %s71, %s73
      %p77 = scmp.eq.s32.totalorder %s16, 0
      %p78 = por %p76, %p77
      %p79 = scmp.ne.s32.totalorder %s71, %s73
      %p80 = scmp.eq.s32.totalorder %s21, 1
      %p81 = por %p79, %p80
      %p82 = scmp.ne.s32.totalorder %s73, %s74
      %p83 = scmp.eq.s32.totalorder %s21, 0
      %p84 = por %p82, %p83
      %p85 = scmp.ne.s32.totalorder %s73, %s74
      %p86 = scmp.eq.s32.totalorder %s22, 1
      %p87 = por %p85, %p86
      %p89 = scmp.ne.s32.totalorder %s74, %s88
      %p90 = scmp.eq.s32.totalorder %s22, 0
      %p91 = por %p89, %p90
      %s93 = sadd.s32 %s92, 1
      %p96 = scmp.eq.s32.totalorder %s16, 1
      %p97 = scmp.ne.s32.totalorder %s92, %s94
      %p98 = scmp.eq.s32.totalorder %s16, 0
      %p99 = por %p97, %p98
      %p100 = scmp.ne.s32.totalorder %s92, %s94
      %p101 = scmp.eq.s32.totalorder %s21, 1
      %p102 = por %p100, %p101
      %p103 = scmp.ne.s32.totalorder %s94, %s95
      %p104 = scmp.eq.s32.totalorder %s21, 0
      %p105 = por %p103, %p104
      %p106 = scmp.ne.s32.totalorder %s94, %s95
      %p107 = scmp.eq.s32.totalorder %s22, 1
      %p108 = por %p106, %p107
      %p110 = scmp.ne.s32.totalorder %s95, %s109
      %p111 = scmp.eq.s32.totalorder %s22, 0
      %p112 = por %p110, %p111
      %s113 = ssub.s32 %s16, %s23
      %p114 = scmp.eq.s32.totalorder %s113, 0
      %s116 = sadd.s32 %s115, 1
      %s117 = scalar_select %p114, %s115, %s116
      %p120 = pneg %p114
      %p121 = scmp.eq.s32.totalorder %s16, 1
      %p122 = por %p120, %p121
      %p123 = scmp.ne.s32.totalorder %s115, %s118
      %p124 = scmp.eq.s32.totalorder %s16, 0
      %p125 = por %p123, %p124
      %p126 = scmp.ne.s32.totalorder %s115, %s118
      %p127 = scmp.eq.s32.totalorder %s21, 1
      %p128 = por %p126, %p127
      %p129 = scmp.ne.s32.totalorder %s118, %s119
      %p130 = scmp.eq.s32.totalorder %s21, 0
      %p131 = por %p129, %p130
      %p132 = scmp.ne.s32.totalorder %s118, %s119
      %p133 = scmp.eq.s32.totalorder %s22, 1
      %p134 = por %p132, %p133
      %p136 = scmp.ne.s32.totalorder %s119, %s135
      %p137 = scmp.eq.s32.totalorder %s22, 0
      %p138 = por %p136, %p137
      %p139 = scmp.le.s32.totalorder 1, %s16
      %p140 = scmp.lt.s32.totalorder %s16, 3
      %p141 = pnand %p139, %p140
      %p142 = pneg %p141
      // Predicated region
      $region9: #{tpu_custom_call.1} parent=5 // pred_check
        _
      $region10: #{tpu_custom_call.1} parent=5 // pred_check_branch
        %144 = sbr.rel (%p141) target = $region12
      $region11: #{tpu_custom_call.1} parent=5 // pred_region
        %s145 = ssub.s32 %s16, 1
        // Predicated region
        $region13: #{tpu_custom_call.1} parent=11 // pred_check
          %p146 = pneg %p63
        $region14: #{tpu_custom_call.1} parent=11 // pred_check_branch
          %148 = sbr.rel (%p146) target = $region16
        $region15: #{tpu_custom_call.1} parent=11 // pred_region
          _
        $region16: #{tpu_custom_call.1} parent=11 // pred_fallthru
          _
        // Predicated region
        $region17: #{tpu_custom_call.1} parent=11 // pred_check
          %p149 = pneg %p84
        $region18: #{tpu_custom_call.1} parent=11 // pred_check_branch
          %151 = sbr.rel (%p149) target = $region20
        $region19: #{tpu_custom_call.1} parent=11 // pred_region
          _
        $region20: #{tpu_custom_call.1} parent=11 // pred_fallthru
          _
        // Predicated region
        $region21: #{tpu_custom_call.1} parent=11 // pred_check
          %p152 = pneg %p105
        $region22: #{tpu_custom_call.1} parent=11 // pred_check_branch
          %154 = sbr.rel (%p152) target = $region24
        $region23: #{tpu_custom_call.1} parent=11 // pred_region
          _
        $region24: #{tpu_custom_call.1} parent=11 // pred_fallthru
          _
      $region12: #{tpu_custom_call.1} parent=5 // pred_fallthru
        _
      %p155 = scmp.lt.s32.totalorder %s16, 2
      // Predicated region
      $region25: #{tpu_custom_call.1} parent=5 // pred_check
        %p156 = pneg %p155
      $region26: #{tpu_custom_call.1} parent=5 // pred_check_branch
        %158 = sbr.rel (%p156) target = $region28
      $region27: #{tpu_custom_call.1} parent=5 // pred_region
        // Predicated region
        $region29: #{tpu_custom_call.1} parent=27 // pred_check
          %p159 = pneg %p36
        $region30: #{tpu_custom_call.1} parent=27 // pred_check_branch
          %161 = sbr.rel (%p159) target = $region32
        $region31: #{tpu_custom_call.1} parent=27 // pred_region
          %s162 = sand.u32 %s26, 1
          %s163 = scalar_lea.sflag [#allocation3], %s162
          %s164 = sand.u32 %s26, 1
          %s165 = smul.addr %s164, 64
          %s166 = scalar_lea.vmem [#allocation2], %s165
          %s168 = ssub.s32 1024, 1024
          %169 = vsyncadd %s163, %s168
          %s170 = smul.addr %s16, 8
          %s171 = smul.addr %s170, 128
          %s172 = scalar_lea.hbm %s0, %s171
          %s173 = sshll.u32 %s166, 4
          %s174 = int_to_ptr.vmem [resolvable:$true] %s173
          %179 = dma.hbm_to_vmem [thread:$0]  %s172, 1024, %s174, %s163, 256, 256, 16
        $region32: #{tpu_custom_call.1} parent=27 // pred_fallthru
          _
      $region28: #{tpu_custom_call.1} parent=5 // pred_fallthru
        _
      %p180 = scmp.le.s32.totalorder 1, %s16
      %p181 = scmp.lt.s32.totalorder %s16, 3
      %p182 = pnand %p180, %p181
      %p183 = pneg %p182
      // Predicated region
      $region33: #{tpu_custom_call.1} parent=5 // pred_check
        _
      $region34: #{tpu_custom_call.1} parent=5 // pred_check_branch
        %185 = sbr.rel (%p182) target = $region36
      $region35: #{tpu_custom_call.1} parent=5 // pred_region
        %s186 = ssub.s32 %s16, 1
        %s187 = sand.u32 %s29, 1
        %s188 = scalar_lea.sflag [#allocation3], %s187
        %s189 = sand.u32 %s29, 1
        %s190 = smul.addr %s189, 64
        %s191 = scalar_lea.vmem [#allocation2], %s190
        // Predicated region
        $region37: #{tpu_custom_call.1} parent=35 // pred_check
          %p192 = pneg %p42
        $region38: #{tpu_custom_call.1} parent=35 // pred_check_branch
          %194 = sbr.rel (%p192) target = $region40
        $region39: #{tpu_custom_call.1} parent=35 // pred_region
          %195 = dma.done %s188, 1024
        $region40: #{tpu_custom_call.1} parent=35 // pred_fallthru
          _
        %s196 = sand.u32 %s29, 1
        %s197 = scalar_lea.sflag [#allocation3], %s196
        %s198 = sand.u32 %s29, 1
        %s199 = smul.addr %s198, 64
        %s200 = scalar_lea.vmem [#allocation2], %s199
        %p201 = pneg %p42
        %p202 = pneg %p39
        %p203 = pneg %p63
        %p204 = pneg %p60
        %p205 = pneg %p84
        %p206 = pneg %p81
        %p207 = pneg %p105
        %p208 = pneg %p102
        %p209 = pneg %p131
        %p210 = pneg %p128
        %s211 = sand.u32 %s118, 1
        %s212 = scalar_lea.sflag [#allocation4], %s211
        %s213 = sand.u32 %s118, 1
        %s214 = smul.addr %s213, 64
        %s215 = scalar_lea.vmem [#allocation5], %s214
        %v217 = vld [vmem:[%s1] sm:$0xff]
        %v218 = vld [vmem:[%s1 + $0x8] sm:$0xff]
        %v219 = vld [vmem:[%s1 + $0x10] sm:$0xff]
        %v220 = vld [vmem:[%s1 + $0x18] sm:$0xff]
        %v221 = vld [vmem:[%s2] sm:$0xf]
        %v222 = vld [vmem:[%s2 + $0x4] sm:$0xf]
        %v223 = vld [vmem:[%s2 + $0x8] sm:$0xf]
        %v224 = vld [vmem:[%s2 + $0xc] sm:$0xf]
        %v225 = vld [vmem:[%s2 + $0x10] sm:$0xf]
        %v226 = vld [vmem:[%s2 + $0x14] sm:$0xf]
        %v227 = vld [vmem:[%s2 + $0x18] sm:$0xf]
        %v228 = vld [vmem:[%s2 + $0x1c] sm:$0xf]
        %v229 = vld [vmem:[%s2 + $0x20] sm:$0xf]
        %v230 = vld [vmem:[%s2 + $0x24] sm:$0xf]
        %v231 = vld [vmem:[%s2 + $0x28] sm:$0xf]
        %v232 = vld [vmem:[%s2 + $0x2c] sm:$0xf]
        %v233 = vld [vmem:[%s2 + $0x30] sm:$0xf]
        %v234 = vld [vmem:[%s2 + $0x34] sm:$0xf]
        %v235 = vld [vmem:[%s2 + $0x38] sm:$0xf]
        %v236 = vld [vmem:[%s2 + $0x3c] sm:$0xf]
        %v237 = vld [vmem:[%s3] sm:$0xf]
        %v238 = vld [vmem:[%s3 + $0x4] sm:$0xf]
        %v239 = vld [vmem:[%s3 + $0x8] sm:$0xf]
        %v240 = vld [vmem:[%s3 + $0xc] sm:$0xf]
        %v241 = vld [vmem:[%s191] sm:$0xff]
        %v242 = vld [vmem:[%s191 + $0x8] sm:$0xff]
        %v243 = vld [vmem:[%s191 + $0x10] sm:$0xff]
        %v244 = vld [vmem:[%s191 + $0x18] sm:$0xff]
        %v245 = vld [vmem:[%s191 + $0x20] sm:$0xff]
        %v246 = vld [vmem:[%s191 + $0x28] sm:$0xff]
        %v247 = vld [vmem:[%s191 + $0x30] sm:$0xff]
        %v248 = vld [vmem:[%s191 + $0x38] sm:$0xff]
        %v249 = vpack.c.bf16 %v243, %v241
        %v250 = vpack.c.bf16 %v244, %v242
        %v251 = vpack.c.bf16 %v247, %v245
        %v252 = vpack.c.bf16 %v248, %v246
        %253 = vxpose.xlu0.c.b16.start [1/8] %v249, 128
        %254 = vxpose.xlu0.c.b16.cont [2/8] %v251, 128
        %255 = vxpose.xlu0.c.b16.cont [3/8] 0, 128
        %256 = vxpose.xlu0.c.b16.cont [4/8] 0, 128
        %257 = vxpose.xlu0.c.b16.cont [5/8] 0, 128
        %258 = vxpose.xlu0.c.b16.cont [6/8] 0, 128
        %259 = vxpose.xlu0.c.b16.cont [7/8] 0, 128
        %260 = vxpose.xlu0.c.b16.end [8/8] 0, 128
        %v261 = vpop.trf.xlu0
        %v262 = vpop.trf.xlu0
        %v263 = vpop.trf.xlu0
        %v264 = vpop.trf.xlu0
        %v265 = vpop.trf.xlu0
        %v266 = vpop.trf.xlu0
        %v267 = vpop.trf.xlu0
        %v268 = vpop.trf.xlu0
        %269 = vxpose.xlu0.c.b16.start [1/8] %v250, 128
        %270 = vxpose.xlu0.c.b16.cont [2/8] %v252, 128
        %271 = vxpose.xlu0.c.b16.cont [3/8] 0, 128
        %272 = vxpose.xlu0.c.b16.cont [4/8] 0, 128
        %273 = vxpose.xlu0.c.b16.cont [5/8] 0, 128
        %274 = vxpose.xlu0.c.b16.cont [6/8] 0, 128
        %275 = vxpose.xlu0.c.b16.cont [7/8] 0, 128
        %276 = vxpose.xlu0.c.b16.end [8/8] 0, 128
        %v277 = vpop.trf.xlu0
        %v278 = vpop.trf.xlu0
        %v279 = vpop.trf.xlu0
        %v280 = vpop.trf.xlu0
        %v281 = vpop.trf.xlu0
        %v282 = vpop.trf.xlu0
        %v283 = vpop.trf.xlu0
        %v284 = vpop.trf.xlu0
        %v289 = vunpack.c.l.b16 %v217
        %v290 = vunpack.c.h.b16 %v217
        %v291 = vunpack.c.l.b16 %v218
        %v292 = vunpack.c.h.b16 %v218
        %v293 = vunpack.c.l.b16 %v219
        %v294 = vunpack.c.h.b16 %v219
        %v295 = vunpack.c.l.b16 %v220
        %v296 = vunpack.c.h.b16 %v220
        %v297 = vpack.c.b16 %v291, %v289
        %v298 = vpack.c.b16 %v292, %v290
        %v299 = vpack.c.b16 %v295, %v293
        %v300 = vpack.c.b16 %v296, %v294
        %vm305 = vcmask 261120
        %v307 = vsel %vm305, %v261, 0
        %v310 = vsel %vm305, %v262, 0
        %v313 = vsel %vm305, %v263, 0
        %v316 = vsel %vm305, %v264, 0
        %v319 = vsel %vm305, %v265, 0
        %v322 = vsel %vm305, %v266, 0
        %v325 = vsel %vm305, %v267, 0
        %v328 = vsel %vm305, %v268, 0
        %v331 = vsel %vm305, %v277, 0
        %v334 = vsel %vm305, %v278, 0
        %v337 = vsel %vm305, %v279, 0
        %v340 = vsel %vm305, %v280, 0
        %v343 = vsel %vm305, %v281, 0
        %v346 = vsel %vm305, %v282, 0
        %v349 = vsel %vm305, %v283, 0
        %v352 = vsel %vm305, %v284, 0
        %354 = vmatprep.subr.bf16.mxu0 0
        %355 = vmatpush1.bf16.msra.mxu0 0
        %356 = vmatprep.subr.bf16.mxu0 0
        %357 = vmatpush1.bf16.msra.mxu0 0
        %358 = vmatprep.subr.bf16.mxu0 0
        %359 = vmatpush1.bf16.msra.mxu0 0
        %360 = vmatprep.subr.bf16.mxu0 0
        %361 = vmatpush1.bf16.msra.mxu0 0
        %362 = vmatprep.subr.bf16.mxu0 0
        %363 = vmatpush1.bf16.msra.mxu0 0
        %364 = vmatprep.subr.bf16.mxu0 0
        %365 = vmatpush1.bf16.msra.mxu0 0
        %366 = vmatprep.subr.bf16.mxu0 %v300
        %367 = vmatpush1.bf16.msra.mxu0 %v299
        %368 = vmatprep.subr.bf16.mxu0 %v298
        %369 = vmatpush1.bf16.msra.mxu0 %v297
        %370 = vmatprep.subr.bf16.mxu0 0
        %371 = vmatpush2.bf16.msra.mxu0 0
        %372 = vmatprep.subr.bf16.mxu0 0
        %373 = vmatpush2.bf16.msra.mxu0 0
        %374 = vmatprep.subr.bf16.mxu0 0
        %375 = vmatpush2.bf16.msra.mxu0 0
        %376 = vmatprep.subr.bf16.mxu0 0
        %377 = vmatpush2.bf16.msra.mxu0 0
        %378 = vmatprep.subr.bf16.mxu0 0
        %379 = vmatpush2.bf16.msra.mxu0 0
        %380 = vmatprep.subr.bf16.mxu0 0
        %381 = vmatpush2.bf16.msra.mxu0 0
        %382 = vmatprep.subr.bf16.mxu0 0
        %383 = vmatpush2.bf16.msra.mxu0 0
        %384 = vmatprep.subr.bf16.mxu0 0
        %385 = vmatpush2.bf16.msra.mxu0 0
        %386 = vmatprep.mubr.bf16.mxu0 0
        %387 = vmatmul.mubr.bf16.gmra.mxu0 %v307
        %v388 = vpop.f32.mrf.mxu0
        %v389 = vadd.f32 0.0, %v388
        %v390 = vpop.f32.mrf.mxu0
        %v391 = vadd.f32 0.0, %v390
        %v392 = vpop.f32.mrf.mxu0
        %v393 = vadd.f32 0.0, %v392
        %v394 = vpop.f32.mrf.mxu0
        %v395 = vadd.f32 0.0, %v394
        %396 = vmatprep.mubr.bf16.mxu0 0
        %397 = vmatmul.mubr.bf16.gmra.mxu0 %v310
        %v398 = vpop.f32.mrf.mxu0
        %v399 = vadd.f32 0.0, %v398
        %v400 = vpop.f32.mrf.mxu0
        %v401 = vadd.f32 0.0, %v400
        %v402 = vpop.f32.mrf.mxu0
        %v403 = vadd.f32 0.0, %v402
        %v404 = vpop.f32.mrf.mxu0
        %v405 = vadd.f32 0.0, %v404
        %406 = vmatprep.mubr.bf16.mxu0 0
        %407 = vmatmul.mubr.bf16.gmra.mxu0 %v313
        %v408 = vpop.f32.mrf.mxu0
        %v409 = vadd.f32 0.0, %v408
        %v410 = vpop.f32.mrf.mxu0
        %v411 = vadd.f32 0.0, %v410
        %v412 = vpop.f32.mrf.mxu0
        %v413 = vadd.f32 0.0, %v412
        %v414 = vpop.f32.mrf.mxu0
        %v415 = vadd.f32 0.0, %v414
        %416 = vmatprep.mubr.bf16.mxu0 0
        %417 = vmatmul.mubr.bf16.gmra.mxu0 %v316
        %v418 = vpop.f32.mrf.mxu0
        %v419 = vadd.f32 0.0, %v418
        %v420 = vpop.f32.mrf.mxu0
        %v421 = vadd.f32 0.0, %v420
        %v422 = vpop.f32.mrf.mxu0
        %v423 = vadd.f32 0.0, %v422
        %v424 = vpop.f32.mrf.mxu0
        %v425 = vadd.f32 0.0, %v424
        %426 = vmatprep.mubr.bf16.mxu0 0
        %427 = vmatmul.mubr.bf16.gmra.mxu0 %v319
        %v428 = vpop.f32.mrf.mxu0
        %v429 = vadd.f32 0.0, %v428
        %v430 = vpop.f32.mrf.mxu0
        %v431 = vadd.f32 0.0, %v430
        %v432 = vpop.f32.mrf.mxu0
        %v433 = vadd.f32 0.0, %v432
        %v434 = vpop.f32.mrf.mxu0
        %v435 = vadd.f32 0.0, %v434
        %436 = vmatprep.mubr.bf16.mxu0 0
        %437 = vmatmul.mubr.bf16.gmra.mxu0 %v322
        %v438 = vpop.f32.mrf.mxu0
        %v439 = vadd.f32 0.0, %v438
        %v440 = vpop.f32.mrf.mxu0
        %v441 = vadd.f32 0.0, %v440
        %v442 = vpop.f32.mrf.mxu0
        %v443 = vadd.f32 0.0, %v442
        %v444 = vpop.f32.mrf.mxu0
        %v445 = vadd.f32 0.0, %v444
        %446 = vmatprep.mubr.bf16.mxu0 0
        %447 = vmatmul.mubr.bf16.gmra.mxu0 %v325
        %v448 = vpop.f32.mrf.mxu0
        %v449 = vadd.f32 0.0, %v448
        %v450 = vpop.f32.mrf.mxu0
        %v451 = vadd.f32 0.0, %v450
        %v452 = vpop.f32.mrf.mxu0
        %v453 = vadd.f32 0.0, %v452
        %v454 = vpop.f32.mrf.mxu0
        %v455 = vadd.f32 0.0, %v454
        %456 = vmatprep.mubr.bf16.mxu0 0
        %457 = vmatmul.mubr.bf16.gmra.mxu0 %v328
        %v458 = vpop.f32.mrf.mxu0
        %v459 = vadd.f32 0.0, %v458
        %v460 = vpop.f32.mrf.mxu0
        %v461 = vadd.f32 0.0, %v460
        %v462 = vpop.f32.mrf.mxu0
        %v463 = vadd.f32 0.0, %v462
        %v464 = vpop.f32.mrf.mxu0
        %v465 = vadd.f32 0.0, %v464
        %466 = vmatprep.mubr.bf16.mxu0 0
        %467 = vmatmul.mubr.bf16.gmra.mxu0 %v331
        %v468 = vpop.f32.mrf.mxu0
        %v469 = vadd.f32 0.0, %v468
        %v470 = vpop.f32.mrf.mxu0
        %v471 = vadd.f32 0.0, %v470
        %v472 = vpop.f32.mrf.mxu0
        %v473 = vadd.f32 0.0, %v472
        %v474 = vpop.f32.mrf.mxu0
        %v475 = vadd.f32 0.0, %v474
        %476 = vmatprep.mubr.bf16.mxu0 0
        %477 = vmatmul.mubr.bf16.gmra.mxu0 %v334
        %v478 = vpop.f32.mrf.mxu0
        %v479 = vadd.f32 0.0, %v478
        %v480 = vpop.f32.mrf.mxu0
        %v481 = vadd.f32 0.0, %v480
        %v482 = vpop.f32.mrf.mxu0
        %v483 = vadd.f32 0.0, %v482
        %v484 = vpop.f32.mrf.mxu0
        %v485 = vadd.f32 0.0, %v484
        %486 = vmatprep.mubr.bf16.mxu0 0
        %487 = vmatmul.mubr.bf16.gmra.mxu0 %v337
        %v488 = vpop.f32.mrf.mxu0
        %v489 = vadd.f32 0.0, %v488
        %v490 = vpop.f32.mrf.mxu0
        %v491 = vadd.f32 0.0, %v490
        %v492 = vpop.f32.mrf.mxu0
        %v493 = vadd.f32 0.0, %v492
        %v494 = vpop.f32.mrf.mxu0
        %v495 = vadd.f32 0.0, %v494
        %496 = vmatprep.mubr.bf16.mxu0 0
        %497 = vmatmul.mubr.bf16.gmra.mxu0 %v340
        %v498 = vpop.f32.mrf.mxu0
        %v499 = vadd.f32 0.0, %v498
        %v500 = vpop.f32.mrf.mxu0
        %v501 = vadd.f32 0.0, %v500
        %v502 = vpop.f32.mrf.mxu0
        %v503 = vadd.f32 0.0, %v502
        %v504 = vpop.f32.mrf.mxu0
        %v505 = vadd.f32 0.0, %v504
        %506 = vmatprep.mubr.bf16.mxu0 0
        %507 = vmatmul.mubr.bf16.gmra.mxu0 %v343
        %v508 = vpop.f32.mrf.mxu0
        %v509 = vadd.f32 0.0, %v508
        %v510 = vpop.f32.mrf.mxu0
        %v511 = vadd.f32 0.0, %v510
        %v512 = vpop.f32.mrf.mxu0
        %v513 = vadd.f32 0.0, %v512
        %v514 = vpop.f32.mrf.mxu0
        %v515 = vadd.f32 0.0, %v514
        %516 = vmatprep.mubr.bf16.mxu0 0
        %517 = vmatmul.mubr.bf16.gmra.mxu0 %v346
        %v518 = vpop.f32.mrf.mxu0
        %v519 = vadd.f32 0.0, %v518
        %v520 = vpop.f32.mrf.mxu0
        %v521 = vadd.f32 0.0, %v520
        %v522 = vpop.f32.mrf.mxu0
        %v523 = vadd.f32 0.0, %v522
        %v524 = vpop.f32.mrf.mxu0
        %v525 = vadd.f32 0.0, %v524
        %526 = vmatprep.mubr.bf16.mxu0 0
        %527 = vmatmul.mubr.bf16.gmra.mxu0 %v349
        %v528 = vpop.f32.mrf.mxu0
        %v529 = vadd.f32 0.0, %v528
        %v530 = vpop.f32.mrf.mxu0
        %v531 = vadd.f32 0.0, %v530
        %v532 = vpop.f32.mrf.mxu0
        %v533 = vadd.f32 0.0, %v532
        %v534 = vpop.f32.mrf.mxu0
        %v535 = vadd.f32 0.0, %v534
        %536 = vmatprep.mubr.bf16.mxu0 0
        %537 = vmatmul.mubr.bf16.gmra.mxu0 %v352
        %v538 = vpop.f32.mrf.mxu0
        %v539 = vadd.f32 0.0, %v538
        %v540 = vpop.f32.mrf.mxu0
        %v541 = vadd.f32 0.0, %v540
        %v542 = vpop.f32.mrf.mxu0
        %v543 = vadd.f32 0.0, %v542
        %v544 = vpop.f32.mrf.mxu0
        %v545 = vadd.f32 0.0, %v544
        %546 = vdwg.mxu0
        %v563 = vunpack.c.l.b16 %v221
        %v564 = vunpack.c.l.b16 %v222
        %v565 = vunpack.c.l.b16 %v223
        %v566 = vunpack.c.l.b16 %v224
        %v567 = vunpack.c.l.b16 %v225
        %v568 = vunpack.c.l.b16 %v226
        %v569 = vunpack.c.l.b16 %v227
        %v570 = vunpack.c.l.b16 %v228
        %v571 = vunpack.c.l.b16 %v229
        %v572 = vunpack.c.l.b16 %v230
        %v573 = vunpack.c.l.b16 %v231
        %v574 = vunpack.c.l.b16 %v232
        %v575 = vunpack.c.l.b16 %v233
        %v576 = vunpack.c.l.b16 %v234
        %v577 = vunpack.c.l.b16 %v235
        %v578 = vunpack.c.l.b16 %v236
        %v579 = vpack.c.b16 %v564, %v563
        %v580 = vpack.c.b16 %v566, %v565
        %v581 = vpack.c.b16 %v568, %v567
        %v582 = vpack.c.b16 %v570, %v569
        %v583 = vpack.c.b16 %v572, %v571
        %v584 = vpack.c.b16 %v574, %v573
        %v585 = vpack.c.b16 %v576, %v575
        %v586 = vpack.c.b16 %v578, %v577
        %v588 = vsel %vm305, %v579, 0
        %v591 = vsel %vm305, %v580, 0
        %v594 = vsel %vm305, %v581, 0
        %v597 = vsel %vm305, %v582, 0
        %v600 = vsel %vm305, %v583, 0
        %v603 = vsel %vm305, %v584, 0
        %v606 = vsel %vm305, %v585, 0
        %v609 = vsel %vm305, %v586, 0
        %611 = vmatprep.subr.bf16.mxu0 0
        %612 = vmatpush1.bf16.msra.mxu0 0
        %613 = vmatprep.subr.bf16.mxu0 0
        %614 = vmatpush1.bf16.msra.mxu0 0
        %615 = vmatprep.subr.bf16.mxu0 0
        %616 = vmatpush1.bf16.msra.mxu0 0
        %617 = vmatprep.subr.bf16.mxu0 0
        %618 = vmatpush1.bf16.msra.mxu0 0
        %619 = vmatprep.subr.bf16.mxu0 0
        %620 = vmatpush1.bf16.msra.mxu0 0
        %621 = vmatprep.subr.bf16.mxu0 0
        %622 = vmatpush1.bf16.msra.mxu0 0
        %623 = vmatprep.subr.bf16.mxu0 %v252
        %624 = vmatpush1.bf16.msra.mxu0 %v251
        %625 = vmatprep.subr.bf16.mxu0 %v250
        %626 = vmatpush1.bf16.msra.mxu0 %v249
        %627 = vmatprep.subr.bf16.mxu0 0
        %628 = vmatpush2.bf16.msra.mxu0 0
        %629 = vmatprep.subr.bf16.mxu0 0
        %630 = vmatpush2.bf16.msra.mxu0 0
        %631 = vmatprep.subr.bf16.mxu0 0
        %632 = vmatpush2.bf16.msra.mxu0 0
        %633 = vmatprep.subr.bf16.mxu0 0
        %634 = vmatpush2.bf16.msra.mxu0 0
        %635 = vmatprep.subr.bf16.mxu0 0
        %636 = vmatpush2.bf16.msra.mxu0 0
        %637 = vmatprep.subr.bf16.mxu0 0
        %638 = vmatpush2.bf16.msra.mxu0 0
        %639 = vmatprep.subr.bf16.mxu0 0
        %640 = vmatpush2.bf16.msra.mxu0 0
        %641 = vmatprep.subr.bf16.mxu0 0
        %642 = vmatpush2.bf16.msra.mxu0 0
        %643 = vmatprep.mubr.bf16.mxu0 0
        %644 = vmatmul.mubr.bf16.gmra.mxu0 %v588
        %v645 = vpop.f32.mrf.mxu0
        %v646 = vadd.f32 0.0, %v645
        %v647 = vpop.f32.mrf.mxu0
        %v648 = vadd.f32 0.0, %v647
        %v649 = vpop.f32.mrf.mxu0
        %v650 = vadd.f32 0.0, %v649
        %v651 = vpop.f32.mrf.mxu0
        %v652 = vadd.f32 0.0, %v651
        %653 = vmatprep.mubr.bf16.mxu0 0
        %654 = vmatmul.mubr.bf16.gmra.mxu0 %v591
        %v655 = vpop.f32.mrf.mxu0
        %v656 = vadd.f32 0.0, %v655
        %v657 = vpop.f32.mrf.mxu0
        %v658 = vadd.f32 0.0, %v657
        %v659 = vpop.f32.mrf.mxu0
        %v660 = vadd.f32 0.0, %v659
        %v661 = vpop.f32.mrf.mxu0
        %v662 = vadd.f32 0.0, %v661
        %663 = vmatprep.mubr.bf16.mxu0 0
        %664 = vmatmul.mubr.bf16.gmra.mxu0 %v594
        %v665 = vpop.f32.mrf.mxu0
        %v666 = vadd.f32 0.0, %v665
        %v667 = vpop.f32.mrf.mxu0
        %v668 = vadd.f32 0.0, %v667
        %v669 = vpop.f32.mrf.mxu0
        %v670 = vadd.f32 0.0, %v669
        %v671 = vpop.f32.mrf.mxu0
        %v672 = vadd.f32 0.0, %v671
        %673 = vmatprep.mubr.bf16.mxu0 0
        %674 = vmatmul.mubr.bf16.gmra.mxu0 %v597
        %v675 = vpop.f32.mrf.mxu0
        %v676 = vadd.f32 0.0, %v675
        %v677 = vpop.f32.mrf.mxu0
        %v678 = vadd.f32 0.0, %v677
        %v679 = vpop.f32.mrf.mxu0
        %v680 = vadd.f32 0.0, %v679
        %v681 = vpop.f32.mrf.mxu0
        %v682 = vadd.f32 0.0, %v681
        %683 = vmatprep.mubr.bf16.mxu0 0
        %684 = vmatmul.mubr.bf16.gmra.mxu0 %v600
        %v685 = vpop.f32.mrf.mxu0
        %v686 = vadd.f32 0.0, %v685
        %v687 = vpop.f32.mrf.mxu0
        %v688 = vadd.f32 0.0, %v687
        %v689 = vpop.f32.mrf.mxu0
        %v690 = vadd.f32 0.0, %v689
        %v691 = vpop.f32.mrf.mxu0
        %v692 = vadd.f32 0.0, %v691
        %693 = vmatprep.mubr.bf16.mxu0 0
        %694 = vmatmul.mubr.bf16.gmra.mxu0 %v603
        %v695 = vpop.f32.mrf.mxu0
        %v696 = vadd.f32 0.0, %v695
        %v697 = vpop.f32.mrf.mxu0
        %v698 = vadd.f32 0.0, %v697
        %v699 = vpop.f32.mrf.mxu0
        %v700 = vadd.f32 0.0, %v699
        %v701 = vpop.f32.mrf.mxu0
        %v702 = vadd.f32 0.0, %v701
        %703 = vmatprep.mubr.bf16.mxu0 0
        %704 = vmatmul.mubr.bf16.gmra.mxu0 %v606
        %v705 = vpop.f32.mrf.mxu0
        %v706 = vadd.f32 0.0, %v705
        %v707 = vpop.f32.mrf.mxu0
        %v708 = vadd.f32 0.0, %v707
        %v709 = vpop.f32.mrf.mxu0
        %v710 = vadd.f32 0.0, %v709
        %v711 = vpop.f32.mrf.mxu0
        %v712 = vadd.f32 0.0, %v711
        %713 = vmatprep.mubr.bf16.mxu0 0
        %714 = vmatmul.mubr.bf16.gmra.mxu0 %v609
        %v715 = vpop.f32.mrf.mxu0
        %v716 = vadd.f32 0.0, %v715
        %v717 = vpop.f32.mrf.mxu0
        %v718 = vadd.f32 0.0, %v717
        %v719 = vpop.f32.mrf.mxu0
        %v720 = vadd.f32 0.0, %v719
        %v721 = vpop.f32.mrf.mxu0
        %v722 = vadd.f32 0.0, %v721
        %723 = vdwg.mxu0
        %v724 = vpack.c.bf16 %v393, %v389
        %v725 = vpack.c.bf16 %v403, %v399
        %v726 = vpack.c.bf16 %v413, %v409
        %v727 = vpack.c.bf16 %v423, %v419
        %v728 = vpack.c.bf16 %v433, %v429
        %v729 = vpack.c.bf16 %v443, %v439
        %v730 = vpack.c.bf16 %v453, %v449
        %v731 = vpack.c.bf16 %v463, %v459
        %v732 = vpack.c.bf16 %v473, %v469
        %v733 = vpack.c.bf16 %v483, %v479
        %v734 = vpack.c.bf16 %v493, %v489
        %v735 = vpack.c.bf16 %v503, %v499
        %v736 = vpack.c.bf16 %v513, %v509
        %v737 = vpack.c.bf16 %v523, %v519
        %v738 = vpack.c.bf16 %v533, %v529
        %v739 = vpack.c.bf16 %v543, %v539
        %v740 = vpack.c.bf16 %v650, %v646
        %v741 = vpack.c.bf16 %v652, %v648
        %v742 = vpack.c.bf16 %v660, %v656
        %v743 = vpack.c.bf16 %v662, %v658
        %v744 = vpack.c.bf16 %v670, %v666
        %v745 = vpack.c.bf16 %v672, %v668
        %v746 = vpack.c.bf16 %v680, %v676
        %v747 = vpack.c.bf16 %v682, %v678
        %v748 = vpack.c.bf16 %v690, %v686
        %v749 = vpack.c.bf16 %v692, %v688
        %v750 = vpack.c.bf16 %v700, %v696
        %v751 = vpack.c.bf16 %v702, %v698
        %v752 = vpack.c.bf16 %v710, %v706
        %v753 = vpack.c.bf16 %v712, %v708
        %v754 = vpack.c.bf16 %v720, %v716
        %v755 = vpack.c.bf16 %v722, %v718
        %756 = vmatprep.subr.bf16.mxu0 %v755
        %757 = vmatpush1.bf16.msra.mxu0 %v754
        %758 = vmatprep.subr.bf16.mxu0 %v753
        %759 = vmatpush1.bf16.msra.mxu0 %v752
        %760 = vmatprep.subr.bf16.mxu0 %v751
        %761 = vmatpush1.bf16.msra.mxu0 %v750
        %762 = vmatprep.subr.bf16.mxu0 %v749
        %763 = vmatpush1.bf16.msra.mxu0 %v748
        %764 = vmatprep.subr.bf16.mxu0 %v747
        %765 = vmatpush1.bf16.msra.mxu0 %v746
        %766 = vmatprep.subr.bf16.mxu0 %v745
        %767 = vmatpush1.bf16.msra.mxu0 %v744
        %768 = vmatprep.subr.bf16.mxu0 %v743
        %769 = vmatpush1.bf16.msra.mxu0 %v742
        %770 = vmatprep.subr.bf16.mxu0 %v741
        %771 = vmatpush1.bf16.msra.mxu0 %v740
        %772 = vmatprep.subr.bf16.mxu0 0
        %773 = vmatpush2.bf16.msra.mxu0 0
        %774 = vmatprep.subr.bf16.mxu0 0
        %775 = vmatpush2.bf16.msra.mxu0 0
        %776 = vmatprep.subr.bf16.mxu0 0
        %777 = vmatpush2.bf16.msra.mxu0 0
        %778 = vmatprep.subr.bf16.mxu0 0
        %779 = vmatpush2.bf16.msra.mxu0 0
        %780 = vmatprep.subr.bf16.mxu0 0
        %781 = vmatpush2.bf16.msra.mxu0 0
        %782 = vmatprep.subr.bf16.mxu0 0
        %783 = vmatpush2.bf16.msra.mxu0 0
        %784 = vmatprep.subr.bf16.mxu0 0
        %785 = vmatpush2.bf16.msra.mxu0 0
        %786 = vmatprep.subr.bf16.mxu0 0
        %787 = vmatpush2.bf16.msra.mxu0 0
        %788 = vmatprep.mubr.bf16.mxu0 0
        %789 = vmatmul.mubr.bf16.gmra.mxu0 %v724
        %v790 = vpop.f32.mrf.mxu0
        %v791 = vadd.f32 0.0, %v790
        %v792 = vpop.f32.mrf.mxu0
        %v793 = vadd.f32 0.0, %v792
        %v794 = vpop.f32.mrf.mxu0
        %v795 = vadd.f32 0.0, %v794
        %v796 = vpop.f32.mrf.mxu0
        %v797 = vadd.f32 0.0, %v796
        %798 = vmatprep.mubr.bf16.mxu0 0
        %799 = vmatmul.mubr.bf16.gmra.mxu0 %v725
        %v800 = vpop.f32.mrf.mxu0
        %v801 = vadd.f32 0.0, %v800
        %v802 = vpop.f32.mrf.mxu0
        %v803 = vadd.f32 0.0, %v802
        %v804 = vpop.f32.mrf.mxu0
        %v805 = vadd.f32 0.0, %v804
        %v806 = vpop.f32.mrf.mxu0
        %v807 = vadd.f32 0.0, %v806
        %808 = vmatprep.mubr.bf16.mxu0 0
        %809 = vmatmul.mubr.bf16.gmra.mxu0 %v726
        %v810 = vpop.f32.mrf.mxu0
        %v811 = vadd.f32 0.0, %v810
        %v812 = vpop.f32.mrf.mxu0
        %v813 = vadd.f32 0.0, %v812
        %v814 = vpop.f32.mrf.mxu0
        %v815 = vadd.f32 0.0, %v814
        %v816 = vpop.f32.mrf.mxu0
        %v817 = vadd.f32 0.0, %v816
        %818 = vmatprep.mubr.bf16.mxu0 0
        %819 = vmatmul.mubr.bf16.gmra.mxu0 %v727
        %v820 = vpop.f32.mrf.mxu0
        %v821 = vadd.f32 0.0, %v820
        %v822 = vpop.f32.mrf.mxu0
        %v823 = vadd.f32 0.0, %v822
        %v824 = vpop.f32.mrf.mxu0
        %v825 = vadd.f32 0.0, %v824
        %v826 = vpop.f32.mrf.mxu0
        %v827 = vadd.f32 0.0, %v826
        %828 = vmatprep.mubr.bf16.mxu0 0
        %829 = vmatmul.mubr.bf16.gmra.mxu0 %v728
        %v830 = vpop.f32.mrf.mxu0
        %v831 = vadd.f32 0.0, %v830
        %v832 = vpop.f32.mrf.mxu0
        %v833 = vadd.f32 0.0, %v832
        %v834 = vpop.f32.mrf.mxu0
        %v835 = vadd.f32 0.0, %v834
        %v836 = vpop.f32.mrf.mxu0
        %v837 = vadd.f32 0.0, %v836
        %838 = vmatprep.mubr.bf16.mxu0 0
        %839 = vmatmul.mubr.bf16.gmra.mxu0 %v729
        %v840 = vpop.f32.mrf.mxu0
        %v841 = vadd.f32 0.0, %v840
        %v842 = vpop.f32.mrf.mxu0
        %v843 = vadd.f32 0.0, %v842
        %v844 = vpop.f32.mrf.mxu0
        %v845 = vadd.f32 0.0, %v844
        %v846 = vpop.f32.mrf.mxu0
        %v847 = vadd.f32 0.0, %v846
        %848 = vmatprep.mubr.bf16.mxu0 0
        %849 = vmatmul.mubr.bf16.gmra.mxu0 %v730
        %v850 = vpop.f32.mrf.mxu0
        %v851 = vadd.f32 0.0, %v850
        %v852 = vpop.f32.mrf.mxu0
        %v853 = vadd.f32 0.0, %v852
        %v854 = vpop.f32.mrf.mxu0
        %v855 = vadd.f32 0.0, %v854
        %v856 = vpop.f32.mrf.mxu0
        %v857 = vadd.f32 0.0, %v856
        %858 = vmatprep.mubr.bf16.mxu0 0
        %859 = vmatmul.mubr.bf16.gmra.mxu0 %v731
        %v860 = vpop.f32.mrf.mxu0
        %v861 = vadd.f32 0.0, %v860
        %v862 = vpop.f32.mrf.mxu0
        %v863 = vadd.f32 0.0, %v862
        %v864 = vpop.f32.mrf.mxu0
        %v865 = vadd.f32 0.0, %v864
        %v866 = vpop.f32.mrf.mxu0
        %v867 = vadd.f32 0.0, %v866
        %868 = vmatprep.mubr.bf16.mxu0 0
        %869 = vmatmul.mubr.bf16.gmra.mxu0 %v732
        %v870 = vpop.f32.mrf.mxu0
        %v871 = vadd.f32 0.0, %v870
        %v872 = vpop.f32.mrf.mxu0
        %v873 = vadd.f32 0.0, %v872
        %v874 = vpop.f32.mrf.mxu0
        %v875 = vadd.f32 0.0, %v874
        %v876 = vpop.f32.mrf.mxu0
        %v877 = vadd.f32 0.0, %v876
        %878 = vmatprep.mubr.bf16.mxu0 0
        %879 = vmatmul.mubr.bf16.gmra.mxu0 %v733
        %v880 = vpop.f32.mrf.mxu0
        %v881 = vadd.f32 0.0, %v880
        %v882 = vpop.f32.mrf.mxu0
        %v883 = vadd.f32 0.0, %v882
        %v884 = vpop.f32.mrf.mxu0
        %v885 = vadd.f32 0.0, %v884
        %v886 = vpop.f32.mrf.mxu0
        %v887 = vadd.f32 0.0, %v886
        %888 = vmatprep.mubr.bf16.mxu0 0
        %889 = vmatmul.mubr.bf16.gmra.mxu0 %v734
        %v890 = vpop.f32.mrf.mxu0
        %v891 = vadd.f32 0.0, %v890
        %v892 = vpop.f32.mrf.mxu0
        %v893 = vadd.f32 0.0, %v892
        %v894 = vpop.f32.mrf.mxu0
        %v895 = vadd.f32 0.0, %v894
        %v896 = vpop.f32.mrf.mxu0
        %v897 = vadd.f32 0.0, %v896
        %898 = vmatprep.mubr.bf16.mxu0 0
        %899 = vmatmul.mubr.bf16.gmra.mxu0 %v735
        %v900 = vpop.f32.mrf.mxu0
        %v901 = vadd.f32 0.0, %v900
        %v902 = vpop.f32.mrf.mxu0
        %v903 = vadd.f32 0.0, %v902
        %v904 = vpop.f32.mrf.mxu0
        %v905 = vadd.f32 0.0, %v904
        %v906 = vpop.f32.mrf.mxu0
        %v907 = vadd.f32 0.0, %v906
        %908 = vmatprep.mubr.bf16.mxu0 0
        %909 = vmatmul.mubr.bf16.gmra.mxu0 %v736
        %v910 = vpop.f32.mrf.mxu0
        %v911 = vadd.f32 0.0, %v910
        %v912 = vpop.f32.mrf.mxu0
        %v913 = vadd.f32 0.0, %v912
        %v914 = vpop.f32.mrf.mxu0
        %v915 = vadd.f32 0.0, %v914
        %v916 = vpop.f32.mrf.mxu0
        %v917 = vadd.f32 0.0, %v916
        %918 = vmatprep.mubr.bf16.mxu0 0
        %919 = vmatmul.mubr.bf16.gmra.mxu0 %v737
        %v920 = vpop.f32.mrf.mxu0
        %v921 = vadd.f32 0.0, %v920
        %v922 = vpop.f32.mrf.mxu0
        %v923 = vadd.f32 0.0, %v922
        %v924 = vpop.f32.mrf.mxu0
        %v925 = vadd.f32 0.0, %v924
        %v926 = vpop.f32.mrf.mxu0
        %v927 = vadd.f32 0.0, %v926
        %928 = vmatprep.mubr.bf16.mxu0 0
        %929 = vmatmul.mubr.bf16.gmra.mxu0 %v738
        %v930 = vpop.f32.mrf.mxu0
        %v931 = vadd.f32 0.0, %v930
        %v932 = vpop.f32.mrf.mxu0
        %v933 = vadd.f32 0.0, %v932
        %v934 = vpop.f32.mrf.mxu0
        %v935 = vadd.f32 0.0, %v934
        %v936 = vpop.f32.mrf.mxu0
        %v937 = vadd.f32 0.0, %v936
        %938 = vmatprep.mubr.bf16.mxu0 0
        %939 = vmatmul.mubr.bf16.gmra.mxu0 %v739
        %v940 = vpop.f32.mrf.mxu0
        %v941 = vadd.f32 0.0, %v940
        %v942 = vpop.f32.mrf.mxu0
        %v943 = vadd.f32 0.0, %v942
        %v944 = vpop.f32.mrf.mxu0
        %v945 = vadd.f32 0.0, %v944
        %v946 = vpop.f32.mrf.mxu0
        %v947 = vadd.f32 0.0, %v946
        %948 = vdwg.mxu0
        %v949 = vmax.f32 %v791, %v793
        %950 = vmax.xlane.f32.xlu0 %v949
        %v951 = vpop.xlane.xlu0 %950
        %v952 = vmax.f32 %v795, %v797
        %953 = vmax.xlane.f32.xlu0 %v952
        %v954 = vpop.xlane.xlu0 %953
        %v955 = vmax.f32 %v801, %v803
        %956 = vmax.xlane.f32.xlu0 %v955
        %v957 = vpop.xlane.xlu0 %956
        %v958 = vmax.f32 %v805, %v807
        %959 = vmax.xlane.f32.xlu0 %v958
        %v960 = vpop.xlane.xlu0 %959
        %v961 = vmax.f32 %v811, %v813
        %962 = vmax.xlane.f32.xlu0 %v961
        %v963 = vpop.xlane.xlu0 %962
        %v964 = vmax.f32 %v815, %v817
        %965 = vmax.xlane.f32.xlu0 %v964
        %v966 = vpop.xlane.xlu0 %965
        %v967 = vmax.f32 %v821, %v823
        %968 = vmax.xlane.f32.xlu0 %v967
        %v969 = vpop.xlane.xlu0 %968
        %v970 = vmax.f32 %v825, %v827
        %971 = vmax.xlane.f32.xlu0 %v970
        %v972 = vpop.xlane.xlu0 %971
        %v973 = vmax.f32 %v831, %v833
        %974 = vmax.xlane.f32.xlu0 %v973
        %v975 = vpop.xlane.xlu0 %974
        %v976 = vmax.f32 %v835, %v837
        %977 = vmax.xlane.f32.xlu0 %v976
        %v978 = vpop.xlane.xlu0 %977
        %v979 = vmax.f32 %v841, %v843
        %980 = vmax.xlane.f32.xlu0 %v979
        %v981 = vpop.xlane.xlu0 %980
        %v982 = vmax.f32 %v845, %v847
        %983 = vmax.xlane.f32.xlu0 %v982
        %v984 = vpop.xlane.xlu0 %983
        %v985 = vmax.f32 %v851, %v853
        %986 = vmax.xlane.f32.xlu0 %v985
        %v987 = vpop.xlane.xlu0 %986
        %v988 = vmax.f32 %v855, %v857
        %989 = vmax.xlane.f32.xlu0 %v988
        %v990 = vpop.xlane.xlu0 %989
        %v991 = vmax.f32 %v861, %v863
        %992 = vmax.xlane.f32.xlu0 %v991
        %v993 = vpop.xlane.xlu0 %992
        %v994 = vmax.f32 %v865, %v867
        %995 = vmax.xlane.f32.xlu0 %v994
        %v996 = vpop.xlane.xlu0 %995
        %v997 = vmax.f32 %v871, %v873
        %998 = vmax.xlane.f32.xlu0 %v997
        %v999 = vpop.xlane.xlu0 %998
        %v1000 = vmax.f32 %v875, %v877
        %1001 = vmax.xlane.f32.xlu0 %v1000
        %v1002 = vpop.xlane.xlu0 %1001
        %v1003 = vmax.f32 %v881, %v883
        %1004 = vmax.xlane.f32.xlu0 %v1003
        %v1005 = vpop.xlane.xlu0 %1004
        %v1006 = vmax.f32 %v885, %v887
        %1007 = vmax.xlane.f32.xlu0 %v1006
        %v1008 = vpop.xlane.xlu0 %1007
        %v1009 = vmax.f32 %v891, %v893
        %1010 = vmax.xlane.f32.xlu0 %v1009
        %v1011 = vpop.xlane.xlu0 %1010
        %v1012 = vmax.f32 %v895, %v897
        %1013 = vmax.xlane.f32.xlu0 %v1012
        %v1014 = vpop.xlane.xlu0 %1013
        %v1015 = vmax.f32 %v901, %v903
        %1016 = vmax.xlane.f32.xlu0 %v1015
        %v1017 = vpop.xlane.xlu0 %1016
        %v1018 = vmax.f32 %v905, %v907
        %1019 = vmax.xlane.f32.xlu0 %v1018
        %v1020 = vpop.xlane.xlu0 %1019
        %v1021 = vmax.f32 %v911, %v913
        %1022 = vmax.xlane.f32.xlu0 %v1021
        %v1023 = vpop.xlane.xlu0 %1022
        %v1024 = vmax.f32 %v915, %v917
        %1025 = vmax.xlane.f32.xlu0 %v1024
        %v1026 = vpop.xlane.xlu0 %1025
        %v1027 = vmax.f32 %v921, %v923
        %1028 = vmax.xlane.f32.xlu0 %v1027
        %v1029 = vpop.xlane.xlu0 %1028
        %v1030 = vmax.f32 %v925, %v927
        %1031 = vmax.xlane.f32.xlu0 %v1030
        %v1032 = vpop.xlane.xlu0 %1031
        %v1033 = vmax.f32 %v931, %v933
        %1034 = vmax.xlane.f32.xlu0 %v1033
        %v1035 = vpop.xlane.xlu0 %1034
        %v1036 = vmax.f32 %v935, %v937
        %1037 = vmax.xlane.f32.xlu0 %v1036
        %v1038 = vpop.xlane.xlu0 %1037
        %v1039 = vmax.f32 %v941, %v943
        %1040 = vmax.xlane.f32.xlu0 %v1039
        %v1041 = vpop.xlane.xlu0 %1040
        %v1042 = vmax.f32 %v945, %v947
        %1043 = vmax.xlane.f32.xlu0 %v1042
        %v1044 = vpop.xlane.xlu0 %1043
        %v1045 = vsub.f32 %v791, %v951
        %v1046 = vsub.f32 %v793, %v951
        %v1047 = vsub.f32 %v795, %v954
        %v1048 = vsub.f32 %v797, %v954
        %v1049 = vsub.f32 %v801, %v957
        %v1050 = vsub.f32 %v803, %v957
        %v1051 = vsub.f32 %v805, %v960
        %v1052 = vsub.f32 %v807, %v960
        %v1053 = vsub.f32 %v811, %v963
        %v1054 = vsub.f32 %v813, %v963
        %v1055 = vsub.f32 %v815, %v966
        %v1056 = vsub.f32 %v817, %v966
        %v1057 = vsub.f32 %v821, %v969
        %v1058 = vsub.f32 %v823, %v969
        %v1059 = vsub.f32 %v825, %v972
        %v1060 = vsub.f32 %v827, %v972
        %v1061 = vsub.f32 %v831, %v975
        %v1062 = vsub.f32 %v833, %v975
        %v1063 = vsub.f32 %v835, %v978
        %v1064 = vsub.f32 %v837, %v978
        %v1065 = vsub.f32 %v841, %v981
        %v1066 = vsub.f32 %v843, %v981
        %v1067 = vsub.f32 %v845, %v984
        %v1068 = vsub.f32 %v847, %v984
        %v1069 = vsub.f32 %v851, %v987
        %v1070 = vsub.f32 %v853, %v987
        %v1071 = vsub.f32 %v855, %v990
        %v1072 = vsub.f32 %v857, %v990
        %v1073 = vsub.f32 %v861, %v993
        %v1074 = vsub.f32 %v863, %v993
        %v1075 = vsub.f32 %v865, %v996
        %v1076 = vsub.f32 %v867, %v996
        %v1077 = vsub.f32 %v871, %v999
        %v1078 = vsub.f32 %v873, %v999
        %v1079 = vsub.f32 %v875, %v1002
        %v1080 = vsub.f32 %v877, %v1002
        %v1081 = vsub.f32 %v881, %v1005
        %v1082 = vsub.f32 %v883, %v1005
        %v1083 = vsub.f32 %v885, %v1008
        %v1084 = vsub.f32 %v887, %v1008
        %v1085 = vsub.f32 %v891, %v1011
        %v1086 = vsub.f32 %v893, %v1011
        %v1087 = vsub.f32 %v895, %v1014
        %v1088 = vsub.f32 %v897, %v1014
        %v1089 = vsub.f32 %v901, %v1017
        %v1090 = vsub.f32 %v903, %v1017
        %v1091 = vsub.f32 %v905, %v1020
        %v1092 = vsub.f32 %v907, %v1020
        %v1093 = vsub.f32 %v911, %v1023
        %v1094 = vsub.f32 %v913, %v1023
        %v1095 = vsub.f32 %v915, %v1026
        %v1096 = vsub.f32 %v917, %v1026
        %v1097 = vsub.f32 %v921, %v1029
        %v1098 = vsub.f32 %v923, %v1029
        %v1099 = vsub.f32 %v925, %v1032
        %v1100 = vsub.f32 %v927, %v1032
        %v1101 = vsub.f32 %v931, %v1035
        %v1102 = vsub.f32 %v933, %v1035
        %v1103 = vsub.f32 %v935, %v1038
        %v1104 = vsub.f32 %v937, %v1038
        %v1105 = vsub.f32 %v941, %v1041
        %v1106 = vsub.f32 %v943, %v1041
        %v1107 = vsub.f32 %v945, %v1044
        %v1108 = vsub.f32 %v947, %v1044
        %v1109 = vmul.f32 %v1045, 1.442695
        %v1110 = vpow.pop %v1109
        %v1111 = vmul.f32 %v1046, 1.442695
        %v1112 = vpow.pop %v1111
        %v1113 = vmul.f32 %v1047, 1.442695
        %v1114 = vpow.pop %v1113
        %v1115 = vmul.f32 %v1048, 1.442695
        %v1116 = vpow.pop %v1115
        %v1117 = vmul.f32 %v1049, 1.442695
        %v1118 = vpow.pop %v1117
        %v1119 = vmul.f32 %v1050, 1.442695
        %v1120 = vpow.pop %v1119
        %v1121 = vmul.f32 %v1051, 1.442695
        %v1122 = vpow.pop %v1121
        %v1123 = vmul.f32 %v1052, 1.442695
        %v1124 = vpow.pop %v1123
        %v1125 = vmul.f32 %v1053, 1.442695
        %v1126 = vpow.pop %v1125
        %v1127 = vmul.f32 %v1054, 1.442695
        %v1128 = vpow.pop %v1127
        %v1129 = vmul.f32 %v1055, 1.442695
        %v1130 = vpow.pop %v1129
        %v1131 = vmul.f32 %v1056, 1.442695
        %v1132 = vpow.pop %v1131
        %v1133 = vmul.f32 %v1057, 1.442695
        %v1134 = vpow.pop %v1133
        %v1135 = vmul.f32 %v1058, 1.442695
        %v1136 = vpow.pop %v1135
        %v1137 = vmul.f32 %v1059, 1.442695
        %v1138 = vpow.pop %v1137
        %v1139 = vmul.f32 %v1060, 1.442695
        %v1140 = vpow.pop %v1139
        %v1141 = vmul.f32 %v1061, 1.442695
        %v1142 = vpow.pop %v1141
        %v1143 = vmul.f32 %v1062, 1.442695
        %v1144 = vpow.pop %v1143
        %v1145 = vmul.f32 %v1063, 1.442695
        %v1146 = vpow.pop %v1145
        %v1147 = vmul.f32 %v1064, 1.442695
        %v1148 = vpow.pop %v1147
        %v1149 = vmul.f32 %v1065, 1.442695
        %v1150 = vpow.pop %v1149
        %v1151 = vmul.f32 %v1066, 1.442695
        %v1152 = vpow.pop %v1151
        %v1153 = vmul.f32 %v1067, 1.442695
        %v1154 = vpow.pop %v1153
        %v1155 = vmul.f32 %v1068, 1.442695
        %v1156 = vpow.pop %v1155
        %v1157 = vmul.f32 %v1069, 1.442695
        %v1158 = vpow.pop %v1157
        %v1159 = vmul.f32 %v1070, 1.442695
        %v1160 = vpow.pop %v1159
        %v1161 = vmul.f32 %v1071, 1.442695
        %v1162 = vpow.pop %v1161
        %v1163 = vmul.f32 %v1072, 1.442695
        %v1164 = vpow.pop %v1163
        %v1165 = vmul.f32 %v1073, 1.442695
        %v1166 = vpow.pop %v1165
        %v1167 = vmul.f32 %v1074, 1.442695
        %v1168 = vpow.pop %v1167
        %v1169 = vmul.f32 %v1075, 1.442695
        %v1170 = vpow.pop %v1169
        %v1171 = vmul.f32 %v1076, 1.442695
        %v1172 = vpow.pop %v1171
        %v1173 = vmul.f32 %v1077, 1.442695
        %v1174 = vpow.pop %v1173
        %v1175 = vmul.f32 %v1078, 1.442695
        %v1176 = vpow.pop %v1175
        %v1177 = vmul.f32 %v1079, 1.442695
        %v1178 = vpow.pop %v1177
        %v1179 = vmul.f32 %v1080, 1.442695
        %v1180 = vpow.pop %v1179
        %v1181 = vmul.f32 %v1081, 1.442695
        %v1182 = vpow.pop %v1181
        %v1183 = vmul.f32 %v1082, 1.442695
        %v1184 = vpow.pop %v1183
        %v1185 = vmul.f32 %v1083, 1.442695
        %v1186 = vpow.pop %v1185
        %v1187 = vmul.f32 %v1084, 1.442695
        %v1188 = vpow.pop %v1187
        %v1189 = vmul.f32 %v1085, 1.442695
        %v1190 = vpow.pop %v1189
        %v1191 = vmul.f32 %v1086, 1.442695
        %v1192 = vpow.pop %v1191
        %v1193 = vmul.f32 %v1087, 1.442695
        %v1194 = vpow.pop %v1193
        %v1195 = vmul.f32 %v1088, 1.442695
        %v1196 = vpow.pop %v1195
        %v1197 = vmul.f32 %v1089, 1.442695
        %v1198 = vpow.pop %v1197
        %v1199 = vmul.f32 %v1090, 1.442695
        %v1200 = vpow.pop %v1199
        %v1201 = vmul.f32 %v1091, 1.442695
        %v1202 = vpow.pop %v1201
        %v1203 = vmul.f32 %v1092, 1.442695
        %v1204 = vpow.pop %v1203
        %v1205 = vmul.f32 %v1093, 1.442695
        %v1206 = vpow.pop %v1205
        %v1207 = vmul.f32 %v1094, 1.442695
        %v1208 = vpow.pop %v1207
        %v1209 = vmul.f32 %v1095, 1.442695
        %v1210 = vpow.pop %v1209
        %v1211 = vmul.f32 %v1096, 1.442695
        %v1212 = vpow.pop %v1211
        %v1213 = vmul.f32 %v1097, 1.442695
        %v1214 = vpow.pop %v1213
        %v1215 = vmul.f32 %v1098, 1.442695
        %v1216 = vpow.pop %v1215
        %v1217 = vmul.f32 %v1099, 1.442695
        %v1218 = vpow.pop %v1217
        %v1219 = vmul.f32 %v1100, 1.442695
        %v1220 = vpow.pop %v1219
        %v1221 = vmul.f32 %v1101, 1.442695
        %v1222 = vpow.pop %v1221
        %v1223 = vmul.f32 %v1102, 1.442695
        %v1224 = vpow.pop %v1223
        %v1225 = vmul.f32 %v1103, 1.442695
        %v1226 = vpow.pop %v1225
        %v1227 = vmul.f32 %v1104, 1.442695
        %v1228 = vpow.pop %v1227
        %v1229 = vmul.f32 %v1105, 1.442695
        %v1230 = vpow.pop %v1229
        %v1231 = vmul.f32 %v1106, 1.442695
        %v1232 = vpow.pop %v1231
        %v1233 = vmul.f32 %v1107, 1.442695
        %v1234 = vpow.pop %v1233
        %v1235 = vmul.f32 %v1108, 1.442695
        %v1236 = vpow.pop %v1235
        %v1237 = vadd.f32 %v1110, %v1112
        %1238 = vadd.xlane.f32.xlu0 %v1237
        %v1239 = vpop.xlane.xlu0 %1238
        %v1240 = vadd.f32 %v1114, %v1116
        %1241 = vadd.xlane.f32.xlu0 %v1240
        %v1242 = vpop.xlane.xlu0 %1241
        %v1243 = vadd.f32 %v1118, %v1120
        %1244 = vadd.xlane.f32.xlu0 %v1243
        %v1245 = vpop.xlane.xlu0 %1244
        %v1246 = vadd.f32 %v1122, %v1124
        %1247 = vadd.xlane.f32.xlu0 %v1246
        %v1248 = vpop.xlane.xlu0 %1247
        %v1249 = vadd.f32 %v1126, %v1128
        %1250 = vadd.xlane.f32.xlu0 %v1249
        %v1251 = vpop.xlane.xlu0 %1250
        %v1252 = vadd.f32 %v1130, %v1132
        %1253 = vadd.xlane.f32.xlu0 %v1252
        %v1254 = vpop.xlane.xlu0 %1253
        %v1255 = vadd.f32 %v1134, %v1136
        %1256 = vadd.xlane.f32.xlu0 %v1255
        %v1257 = vpop.xlane.xlu0 %1256
        %v1258 = vadd.f32 %v1138, %v1140
        %1259 = vadd.xlane.f32.xlu0 %v1258
        %v1260 = vpop.xlane.xlu0 %1259
        %v1261 = vadd.f32 %v1142, %v1144
        %1262 = vadd.xlane.f32.xlu0 %v1261
        %v1263 = vpop.xlane.xlu0 %1262
        %v1264 = vadd.f32 %v1146, %v1148
        %1265 = vadd.xlane.f32.xlu0 %v1264
        %v1266 = vpop.xlane.xlu0 %1265
        %v1267 = vadd.f32 %v1150, %v1152
        %1268 = vadd.xlane.f32.xlu0 %v1267
        %v1269 = vpop.xlane.xlu0 %1268
        %v1270 = vadd.f32 %v1154, %v1156
        %1271 = vadd.xlane.f32.xlu0 %v1270
        %v1272 = vpop.xlane.xlu0 %1271
        %v1273 = vadd.f32 %v1158, %v1160
        %1274 = vadd.xlane.f32.xlu0 %v1273
        %v1275 = vpop.xlane.xlu0 %1274
        %v1276 = vadd.f32 %v1162, %v1164
        %1277 = vadd.xlane.f32.xlu0 %v1276
        %v1278 = vpop.xlane.xlu0 %1277
        %v1279 = vadd.f32 %v1166, %v1168
        %1280 = vadd.xlane.f32.xlu0 %v1279
        %v1281 = vpop.xlane.xlu0 %1280
        %v1282 = vadd.f32 %v1170, %v1172
        %1283 = vadd.xlane.f32.xlu0 %v1282
        %v1284 = vpop.xlane.xlu0 %1283
        %v1285 = vadd.f32 %v1174, %v1176
        %1286 = vadd.xlane.f32.xlu0 %v1285
        %v1287 = vpop.xlane.xlu0 %1286
        %v1288 = vadd.f32 %v1178, %v1180
        %1289 = vadd.xlane.f32.xlu0 %v1288
        %v1290 = vpop.xlane.xlu0 %1289
        %v1291 = vadd.f32 %v1182, %v1184
        %1292 = vadd.xlane.f32.xlu0 %v1291
        %v1293 = vpop.xlane.xlu0 %1292
        %v1294 = vadd.f32 %v1186, %v1188
        %1295 = vadd.xlane.f32.xlu0 %v1294
        %v1296 = vpop.xlane.xlu0 %1295
        %v1297 = vadd.f32 %v1190, %v1192
        %1298 = vadd.xlane.f32.xlu0 %v1297
        %v1299 = vpop.xlane.xlu0 %1298
        %v1300 = vadd.f32 %v1194, %v1196
        %1301 = vadd.xlane.f32.xlu0 %v1300
        %v1302 = vpop.xlane.xlu0 %1301
        %v1303 = vadd.f32 %v1198, %v1200
        %1304 = vadd.xlane.f32.xlu0 %v1303
        %v1305 = vpop.xlane.xlu0 %1304
        %v1306 = vadd.f32 %v1202, %v1204
        %1307 = vadd.xlane.f32.xlu0 %v1306
        %v1308 = vpop.xlane.xlu0 %1307
        %v1309 = vadd.f32 %v1206, %v1208
        %1310 = vadd.xlane.f32.xlu0 %v1309
        %v1311 = vpop.xlane.xlu0 %1310
        %v1312 = vadd.f32 %v1210, %v1212
        %1313 = vadd.xlane.f32.xlu0 %v1312
        %v1314 = vpop.xlane.xlu0 %1313
        %v1315 = vadd.f32 %v1214, %v1216
        %1316 = vadd.xlane.f32.xlu0 %v1315
        %v1317 = vpop.xlane.xlu0 %1316
        %v1318 = vadd.f32 %v1218, %v1220
        %1319 = vadd.xlane.f32.xlu0 %v1318
        %v1320 = vpop.xlane.xlu0 %1319
        %v1321 = vadd.f32 %v1222, %v1224
        %1322 = vadd.xlane.f32.xlu0 %v1321
        %v1323 = vpop.xlane.xlu0 %1322
        %v1324 = vadd.f32 %v1226, %v1228
        %1325 = vadd.xlane.f32.xlu0 %v1324
        %v1326 = vpop.xlane.xlu0 %1325
        %v1327 = vadd.f32 %v1230, %v1232
        %1328 = vadd.xlane.f32.xlu0 %v1327
        %v1329 = vpop.xlane.xlu0 %1328
        %v1330 = vadd.f32 %v1234, %v1236
        %1331 = vadd.xlane.f32.xlu0 %v1330
        %v1332 = vpop.xlane.xlu0 %1331
        %v1333 = vpack.c.bf16 %v1114, %v1110
        %v1334 = vpack.c.bf16 %v1116, %v1112
        %v1335 = vpack.c.bf16 %v1122, %v1118
        %v1336 = vpack.c.bf16 %v1124, %v1120
        %v1337 = vpack.c.bf16 %v1130, %v1126
        %v1338 = vpack.c.bf16 %v1132, %v1128
        %v1339 = vpack.c.bf16 %v1138, %v1134
        %v1340 = vpack.c.bf16 %v1140, %v1136
        %v1341 = vpack.c.bf16 %v1146, %v1142
        %v1342 = vpack.c.bf16 %v1148, %v1144
        %v1343 = vpack.c.bf16 %v1154, %v1150
        %v1344 = vpack.c.bf16 %v1156, %v1152
        %v1345 = vpack.c.bf16 %v1162, %v1158
        %v1346 = vpack.c.bf16 %v1164, %v1160
        %v1347 = vpack.c.bf16 %v1170, %v1166
        %v1348 = vpack.c.bf16 %v1172, %v1168
        %v1349 = vpack.c.bf16 %v1178, %v1174
        %v1350 = vpack.c.bf16 %v1180, %v1176
        %v1351 = vpack.c.bf16 %v1186, %v1182
        %v1352 = vpack.c.bf16 %v1188, %v1184
        %v1353 = vpack.c.bf16 %v1194, %v1190
        %v1354 = vpack.c.bf16 %v1196, %v1192
        %v1355 = vpack.c.bf16 %v1202, %v1198
        %v1356 = vpack.c.bf16 %v1204, %v1200
        %v1357 = vpack.c.bf16 %v1210, %v1206
        %v1358 = vpack.c.bf16 %v1212, %v1208
        %v1359 = vpack.c.bf16 %v1218, %v1214
        %v1360 = vpack.c.bf16 %v1220, %v1216
        %v1361 = vpack.c.bf16 %v1226, %v1222
        %v1362 = vpack.c.bf16 %v1228, %v1224
        %v1363 = vpack.c.bf16 %v1234, %v1230
        %v1364 = vpack.c.bf16 %v1236, %v1232
        %v1365 = vpack.c.bf16 %v395, %v391
        %v1366 = vpack.c.bf16 %v405, %v401
        %v1367 = vpack.c.bf16 %v415, %v411
        %v1368 = vpack.c.bf16 %v425, %v421
        %v1369 = vpack.c.bf16 %v435, %v431
        %v1370 = vpack.c.bf16 %v445, %v441
        %v1371 = vpack.c.bf16 %v455, %v451
        %v1372 = vpack.c.bf16 %v465, %v461
        %v1373 = vpack.c.bf16 %v475, %v471
        %v1374 = vpack.c.bf16 %v485, %v481
        %v1375 = vpack.c.bf16 %v495, %v491
        %v1376 = vpack.c.bf16 %v505, %v501
        %v1377 = vpack.c.bf16 %v515, %v511
        %v1378 = vpack.c.bf16 %v525, %v521
        %v1379 = vpack.c.bf16 %v535, %v531
        %v1380 = vpack.c.bf16 %v545, %v541
        %1381 = vmatprep.subr.bf16.mxu0 0
        %1382 = vmatpush1.bf16.msra.mxu0 %v1372
        %1383 = vmatprep.subr.bf16.mxu0 0
        %1384 = vmatpush1.bf16.msra.mxu0 %v1371
        %1385 = vmatprep.subr.bf16.mxu0 0
        %1386 = vmatpush1.bf16.msra.mxu0 %v1370
        %1387 = vmatprep.subr.bf16.mxu0 0
        %1388 = vmatpush1.bf16.msra.mxu0 %v1369
        %1389 = vmatprep.subr.bf16.mxu0 0
        %1390 = vmatpush1.bf16.msra.mxu0 %v1368
        %1391 = vmatprep.subr.bf16.mxu0 0
        %1392 = vmatpush1.bf16.msra.mxu0 %v1367
        %1393 = vmatprep.subr.bf16.mxu0 0
        %1394 = vmatpush1.bf16.msra.mxu0 %v1366
        %1395 = vmatprep.subr.bf16.mxu0 0
        %1396 = vmatpush1.bf16.msra.mxu0 %v1365
        %1397 = vmatprep.subr.bf16.mxu0 0
        %1398 = vmatpush2.bf16.msra.mxu0 %v1380
        %1399 = vmatprep.subr.bf16.mxu0 0
        %1400 = vmatpush2.bf16.msra.mxu0 %v1379
        %1401 = vmatprep.subr.bf16.mxu0 0
        %1402 = vmatpush2.bf16.msra.mxu0 %v1378
        %1403 = vmatprep.subr.bf16.mxu0 0
        %1404 = vmatpush2.bf16.msra.mxu0 %v1377
        %1405 = vmatprep.subr.bf16.mxu0 0
        %1406 = vmatpush2.bf16.msra.mxu0 %v1376
        %1407 = vmatprep.subr.bf16.mxu0 0
        %1408 = vmatpush2.bf16.msra.mxu0 %v1375
        %1409 = vmatprep.subr.bf16.mxu0 0
        %1410 = vmatpush2.bf16.msra.mxu0 %v1374
        %1411 = vmatprep.subr.bf16.mxu0 0
        %1412 = vmatpush2.bf16.msra.mxu0 %v1373
        %1413 = vmatprep.mubr.bf16.mxu0 %v1334
        %1414 = vmatmul.mubr.bf16.gmra.mxu0 %v1333
        %v1415 = vpop.f32.mrf.mxu0
        %v1416 = vadd.f32 0.0, %v1415
        %v1417 = vpop.f32.mrf.mxu0
        %v1418 = vpop.f32.mrf.mxu0
        %v1419 = vadd.f32 0.0, %v1418
        %v1420 = vpop.f32.mrf.mxu0
        %1421 = vmatprep.mubr.bf16.mxu0 %v1336
        %1422 = vmatmul.mubr.bf16.gmra.mxu0 %v1335
        %v1423 = vpop.f32.mrf.mxu0
        %v1424 = vadd.f32 0.0, %v1423
        %v1425 = vpop.f32.mrf.mxu0
        %v1426 = vpop.f32.mrf.mxu0
        %v1427 = vadd.f32 0.0, %v1426
        %v1428 = vpop.f32.mrf.mxu0
        %1429 = vmatprep.mubr.bf16.mxu0 %v1338
        %1430 = vmatmul.mubr.bf16.gmra.mxu0 %v1337
        %v1431 = vpop.f32.mrf.mxu0
        %v1432 = vadd.f32 0.0, %v1431
        %v1433 = vpop.f32.mrf.mxu0
        %v1434 = vpop.f32.mrf.mxu0
        %v1435 = vadd.f32 0.0, %v1434
        %v1436 = vpop.f32.mrf.mxu0
        %1437 = vmatprep.mubr.bf16.mxu0 %v1340
        %1438 = vmatmul.mubr.bf16.gmra.mxu0 %v1339
        %v1439 = vpop.f32.mrf.mxu0
        %v1440 = vadd.f32 0.0, %v1439
        %v1441 = vpop.f32.mrf.mxu0
        %v1442 = vpop.f32.mrf.mxu0
        %v1443 = vadd.f32 0.0, %v1442
        %v1444 = vpop.f32.mrf.mxu0
        %1445 = vmatprep.mubr.bf16.mxu0 %v1342
        %1446 = vmatmul.mubr.bf16.gmra.mxu0 %v1341
        %v1447 = vpop.f32.mrf.mxu0
        %v1448 = vadd.f32 0.0, %v1447
        %v1449 = vpop.f32.mrf.mxu0
        %v1450 = vpop.f32.mrf.mxu0
        %v1451 = vadd.f32 0.0, %v1450
        %v1452 = vpop.f32.mrf.mxu0
        %1453 = vmatprep.mubr.bf16.mxu0 %v1344
        %1454 = vmatmul.mubr.bf16.gmra.mxu0 %v1343
        %v1455 = vpop.f32.mrf.mxu0
        %v1456 = vadd.f32 0.0, %v1455
        %v1457 = vpop.f32.mrf.mxu0
        %v1458 = vpop.f32.mrf.mxu0
        %v1459 = vadd.f32 0.0, %v1458
        %v1460 = vpop.f32.mrf.mxu0
        %1461 = vmatprep.mubr.bf16.mxu0 %v1346
        %1462 = vmatmul.mubr.bf16.gmra.mxu0 %v1345
        %v1463 = vpop.f32.mrf.mxu0
        %v1464 = vadd.f32 0.0, %v1463
        %v1465 = vpop.f32.mrf.mxu0
        %v1466 = vpop.f32.mrf.mxu0
        %v1467 = vadd.f32 0.0, %v1466
        %v1468 = vpop.f32.mrf.mxu0
        %1469 = vmatprep.mubr.bf16.mxu0 %v1348
        %1470 = vmatmul.mubr.bf16.gmra.mxu0 %v1347
        %v1471 = vpop.f32.mrf.mxu0
        %v1472 = vadd.f32 0.0, %v1471
        %v1473 = vpop.f32.mrf.mxu0
        %v1474 = vpop.f32.mrf.mxu0
        %v1475 = vadd.f32 0.0, %v1474
        %v1476 = vpop.f32.mrf.mxu0
        %1477 = vmatprep.mubr.bf16.mxu0 %v1350
        %1478 = vmatmul.mubr.bf16.gmra.mxu0 %v1349
        %v1479 = vpop.f32.mrf.mxu0
        %v1480 = vadd.f32 0.0, %v1479
        %v1481 = vpop.f32.mrf.mxu0
        %v1482 = vpop.f32.mrf.mxu0
        %v1483 = vadd.f32 0.0, %v1482
        %v1484 = vpop.f32.mrf.mxu0
        %1485 = vmatprep.mubr.bf16.mxu0 %v1352
        %1486 = vmatmul.mubr.bf16.gmra.mxu0 %v1351
        %v1487 = vpop.f32.mrf.mxu0
        %v1488 = vadd.f32 0.0, %v1487
        %v1489 = vpop.f32.mrf.mxu0
        %v1490 = vpop.f32.mrf.mxu0
        %v1491 = vadd.f32 0.0, %v1490
        %v1492 = vpop.f32.mrf.mxu0
        %1493 = vmatprep.mubr.bf16.mxu0 %v1354
        %1494 = vmatmul.mubr.bf16.gmra.mxu0 %v1353
        %v1495 = vpop.f32.mrf.mxu0
        %v1496 = vadd.f32 0.0, %v1495
        %v1497 = vpop.f32.mrf.mxu0
        %v1498 = vpop.f32.mrf.mxu0
        %v1499 = vadd.f32 0.0, %v1498
        %v1500 = vpop.f32.mrf.mxu0
        %1501 = vmatprep.mubr.bf16.mxu0 %v1356
        %1502 = vmatmul.mubr.bf16.gmra.mxu0 %v1355
        %v1503 = vpop.f32.mrf.mxu0
        %v1504 = vadd.f32 0.0, %v1503
        %v1505 = vpop.f32.mrf.mxu0
        %v1506 = vpop.f32.mrf.mxu0
        %v1507 = vadd.f32 0.0, %v1506
        %v1508 = vpop.f32.mrf.mxu0
        %1509 = vmatprep.mubr.bf16.mxu0 %v1358
        %1510 = vmatmul.mubr.bf16.gmra.mxu0 %v1357
        %v1511 = vpop.f32.mrf.mxu0
        %v1512 = vadd.f32 0.0, %v1511
        %v1513 = vpop.f32.mrf.mxu0
        %v1514 = vpop.f32.mrf.mxu0
        %v1515 = vadd.f32 0.0, %v1514
        %v1516 = vpop.f32.mrf.mxu0
        %1517 = vmatprep.mubr.bf16.mxu0 %v1360
        %1518 = vmatmul.mubr.bf16.gmra.mxu0 %v1359
        %v1519 = vpop.f32.mrf.mxu0
        %v1520 = vadd.f32 0.0, %v1519
        %v1521 = vpop.f32.mrf.mxu0
        %v1522 = vpop.f32.mrf.mxu0
        %v1523 = vadd.f32 0.0, %v1522
        %v1524 = vpop.f32.mrf.mxu0
        %1525 = vmatprep.mubr.bf16.mxu0 %v1362
        %1526 = vmatmul.mubr.bf16.gmra.mxu0 %v1361
        %v1527 = vpop.f32.mrf.mxu0
        %v1528 = vadd.f32 0.0, %v1527
        %v1529 = vpop.f32.mrf.mxu0
        %v1530 = vpop.f32.mrf.mxu0
        %v1531 = vadd.f32 0.0, %v1530
        %v1532 = vpop.f32.mrf.mxu0
        %1533 = vmatprep.mubr.bf16.mxu0 %v1364
        %1534 = vmatmul.mubr.bf16.gmra.mxu0 %v1363
        %v1535 = vpop.f32.mrf.mxu0
        %v1536 = vadd.f32 0.0, %v1535
        %v1537 = vpop.f32.mrf.mxu0
        %v1538 = vpop.f32.mrf.mxu0
        %v1539 = vadd.f32 0.0, %v1538
        %v1540 = vpop.f32.mrf.mxu0
        %1541 = vdwg.mxu0
        %v1542 = vrcp.pop %v1239
        %v1543 = vrcp.pop %v1242
        %v1544 = vrcp.pop %v1245
        %v1545 = vrcp.pop %v1248
        %v1546 = vrcp.pop %v1251
        %v1547 = vrcp.pop %v1254
        %v1548 = vrcp.pop %v1257
        %v1549 = vrcp.pop %v1260
        %v1550 = vrcp.pop %v1263
        %v1551 = vrcp.pop %v1266
        %v1552 = vrcp.pop %v1269
        %v1553 = vrcp.pop %v1272
        %v1554 = vrcp.pop %v1275
        %v1555 = vrcp.pop %v1278
        %v1556 = vrcp.pop %v1281
        %v1557 = vrcp.pop %v1284
        %v1558 = vrcp.pop %v1287
        %v1559 = vrcp.pop %v1290
        %v1560 = vrcp.pop %v1293
        %v1561 = vrcp.pop %v1296
        %v1562 = vrcp.pop %v1299
        %v1563 = vrcp.pop %v1302
        %v1564 = vrcp.pop %v1305
        %v1565 = vrcp.pop %v1308
        %v1566 = vrcp.pop %v1311
        %v1567 = vrcp.pop %v1314
        %v1568 = vrcp.pop %v1317
        %v1569 = vrcp.pop %v1320
        %v1570 = vrcp.pop %v1323
        %v1571 = vrcp.pop %v1326
        %v1572 = vrcp.pop %v1329
        %v1573 = vrcp.pop %v1332
        %v1574 = vmul.f32 %v1416, %v1542
        %v1575 = vmul.f32 %v1419, %v1543
        %v1576 = vmul.f32 %v1424, %v1544
        %v1577 = vmul.f32 %v1427, %v1545
        %v1578 = vmul.f32 %v1432, %v1546
        %v1579 = vmul.f32 %v1435, %v1547
        %v1580 = vmul.f32 %v1440, %v1548
        %v1581 = vmul.f32 %v1443, %v1549
        %v1582 = vmul.f32 %v1448, %v1550
        %v1583 = vmul.f32 %v1451, %v1551
        %v1584 = vmul.f32 %v1456, %v1552
        %v1585 = vmul.f32 %v1459, %v1553
        %v1586 = vmul.f32 %v1464, %v1554
        %v1587 = vmul.f32 %v1467, %v1555
        %v1588 = vmul.f32 %v1472, %v1556
        %v1589 = vmul.f32 %v1475, %v1557
        %v1590 = vmul.f32 %v1480, %v1558
        %v1591 = vmul.f32 %v1483, %v1559
        %v1592 = vmul.f32 %v1488, %v1560
        %v1593 = vmul.f32 %v1491, %v1561
        %v1594 = vmul.f32 %v1496, %v1562
        %v1595 = vmul.f32 %v1499, %v1563
        %v1596 = vmul.f32 %v1504, %v1564
        %v1597 = vmul.f32 %v1507, %v1565
        %v1598 = vmul.f32 %v1512, %v1566
        %v1599 = vmul.f32 %v1515, %v1567
        %v1600 = vmul.f32 %v1520, %v1568
        %v1601 = vmul.f32 %v1523, %v1569
        %v1602 = vmul.f32 %v1528, %v1570
        %v1603 = vmul.f32 %v1531, %v1571
        %v1604 = vmul.f32 %v1536, %v1572
        %v1605 = vmul.f32 %v1539, %v1573
        %v1606 = vpack.c.bf16 %v1575, %v1574
        %v1607 = vpack.c.bf16 %v1577, %v1576
        %v1608 = vpack.c.bf16 %v1579, %v1578
        %v1609 = vpack.c.bf16 %v1581, %v1580
        %v1610 = vpack.c.bf16 %v1583, %v1582
        %v1611 = vpack.c.bf16 %v1585, %v1584
        %v1612 = vpack.c.bf16 %v1587, %v1586
        %v1613 = vpack.c.bf16 %v1589, %v1588
        %v1614 = vpack.c.bf16 %v1591, %v1590
        %v1615 = vpack.c.bf16 %v1593, %v1592
        %v1616 = vpack.c.bf16 %v1595, %v1594
        %v1617 = vpack.c.bf16 %v1597, %v1596
        %v1618 = vpack.c.bf16 %v1599, %v1598
        %v1619 = vpack.c.bf16 %v1601, %v1600
        %v1620 = vpack.c.bf16 %v1603, %v1602
        %v1621 = vpack.c.bf16 %v1605, %v1604
        %v1626 = vunpack.c.l.b16 %v237
        %v1627 = vunpack.c.l.b16 %v238
        %v1628 = vunpack.c.l.b16 %v239
        %v1629 = vunpack.c.l.b16 %v240
        %v1630 = vpack.c.b16 %v1627, %v1626
        %v1631 = vpack.c.b16 %v1629, %v1628
        %1634 = vmatprep.subr.bf16.mxu0 0
        %1635 = vmatpush1.bf16.xpose.msra.mxu0 %v1613
        %1636 = vmatprep.subr.bf16.mxu0 0
        %1637 = vmatpush1.bf16.xpose.msra.mxu0 %v1612
        %1638 = vmatprep.subr.bf16.mxu0 0
        %1639 = vmatpush1.bf16.xpose.msra.mxu0 %v1611
        %1640 = vmatprep.subr.bf16.mxu0 0
        %1641 = vmatpush1.bf16.xpose.msra.mxu0 %v1610
        %1642 = vmatprep.subr.bf16.mxu0 0
        %1643 = vmatpush1.bf16.xpose.msra.mxu0 %v1609
        %1644 = vmatprep.subr.bf16.mxu0 0
        %1645 = vmatpush1.bf16.xpose.msra.mxu0 %v1608
        %1646 = vmatprep.subr.bf16.mxu0 0
        %1647 = vmatpush1.bf16.xpose.msra.mxu0 %v1607
        %1648 = vmatprep.subr.bf16.mxu0 0
        %1649 = vmatpush1.bf16.xpose.msra.mxu0 %v1606
        %1650 = vmatprep.subr.bf16.mxu0 0
        %1651 = vmatpush2.bf16.xpose.msra.mxu0 %v1621
        %1652 = vmatprep.subr.bf16.mxu0 0
        %1653 = vmatpush2.bf16.xpose.msra.mxu0 %v1620
        %1654 = vmatprep.subr.bf16.mxu0 0
        %1655 = vmatpush2.bf16.xpose.msra.mxu0 %v1619
        %1656 = vmatprep.subr.bf16.mxu0 0
        %1657 = vmatpush2.bf16.xpose.msra.mxu0 %v1618
        %1658 = vmatprep.subr.bf16.mxu0 0
        %1659 = vmatpush2.bf16.xpose.msra.mxu0 %v1617
        %1660 = vmatprep.subr.bf16.mxu0 0
        %1661 = vmatpush2.bf16.xpose.msra.mxu0 %v1616
        %1662 = vmatprep.subr.bf16.mxu0 0
        %1663 = vmatpush2.bf16.xpose.msra.mxu0 %v1615
        %1664 = vmatprep.subr.bf16.mxu0 0
        %1665 = vmatpush2.bf16.xpose.msra.mxu0 %v1614
        %1666 = vmatprep.mubr.bf16.mxu0 0
        %1667 = vmatmul.mubr.bf16.gmra.mxu0 %v1630
        %v1668 = vpop.f32.mrf.mxu0
        %v1669 = vadd.f32 0.0, %v1668
        %v1670 = vpop.f32.mrf.mxu0
        %v1671 = vadd.f32 0.0, %v1670
        %v1672 = vpop.f32.mrf.mxu0
        %v1673 = vadd.f32 0.0, %v1672
        %v1674 = vpop.f32.mrf.mxu0
        %v1675 = vadd.f32 0.0, %v1674
        %1676 = vmatprep.mubr.bf16.mxu0 0
        %1677 = vmatmul.mubr.bf16.gmra.mxu0 %v1631
        %v1678 = vpop.f32.mrf.mxu0
        %v1679 = vadd.f32 0.0, %v1678
        %v1680 = vpop.f32.mrf.mxu0
        %v1681 = vadd.f32 0.0, %v1680
        %v1682 = vpop.f32.mrf.mxu0
        %v1683 = vadd.f32 0.0, %v1682
        %v1684 = vpop.f32.mrf.mxu0
        %v1685 = vadd.f32 0.0, %v1684
        %1686 = vdwg.mxu0
        %v1687 = vadd.f32 %v241, %v1669
        %v1688 = vadd.f32 %v242, %v1671
        %v1689 = vadd.f32 %v243, %v1673
        %v1690 = vadd.f32 %v244, %v1675
        %v1691 = vadd.f32 %v245, %v1679
        %v1692 = vadd.f32 %v246, %v1681
        %v1693 = vadd.f32 %v247, %v1683
        %v1694 = vadd.f32 %v248, %v1685
        %1695 = vst [vmem:[%s215] sm:$0xff] %v1687
        %1696 = vst [vmem:[%s215 + $0x8] sm:$0xff] %v1688
        %1697 = vst [vmem:[%s215 + $0x10] sm:$0xff] %v1689
        %1698 = vst [vmem:[%s215 + $0x18] sm:$0xff] %v1690
        %1699 = vst [vmem:[%s215 + $0x20] sm:$0xff] %v1691
        %1700 = vst [vmem:[%s215 + $0x28] sm:$0xff] %v1692
        %1701 = vst [vmem:[%s215 + $0x30] sm:$0xff] %v1693
        %1702 = vst [vmem:[%s215 + $0x38] sm:$0xff] %v1694
        %s1703 = sand.u32 %s118, 1
        %s1704 = scalar_lea.sflag [#allocation4], %s1703
        %s1705 = sand.u32 %s118, 1
        %s1706 = smul.addr %s1705, 64
        %s1707 = scalar_lea.vmem [#allocation5], %s1706
        // Predicated region
        $region41: #{tpu_custom_call.1} parent=35 // pred_check
          %p1708 = pneg %p128
        $region42: #{tpu_custom_call.1} parent=35 // pred_check_branch
          %1710 = sbr.rel (%p1708) target = $region44
        $region43: #{tpu_custom_call.1} parent=35 // pred_region
          %s1712 = ssub.s32 1024, 1024
          %1713 = vsyncadd %s1704, %s1712
          %s1714 = smul.addr %s21, 8
          %s1715 = smul.addr %s1714, 128
          %s1716 = scalar_lea.hbm %s4, %s1715
          %s1717 = sshll.u32 %s1707, 4
          %s1718 = int_to_ptr.vmem [resolvable:$true] %s1717
          %1723 = dma.vmem_to_hbm [thread:$0]  %s1718, 1024, %s1716, %s1704, 256, 256, 16
        $region44: #{tpu_custom_call.1} parent=35 // pred_fallthru
          _
      $region36: #{tpu_custom_call.1} parent=5 // pred_fallthru
        _
      %p1724 = scmp.le.s32.totalorder 2, %s16
      // Predicated region
      $region45: #{tpu_custom_call.1} parent=5 // pred_check
        %p1725 = pneg %p1724
      $region46: #{tpu_custom_call.1} parent=5 // pred_check_branch
        %1727 = sbr.rel (%p1725) target = $region48
      $region47: #{tpu_custom_call.1} parent=5 // pred_region
        %s1728 = ssub.s32 %s16, 2
        // Predicated region
        $region49: #{tpu_custom_call.1} parent=47 // pred_check
          %p1729 = pneg %p134
        $region50: #{tpu_custom_call.1} parent=47 // pred_check_branch
          %1731 = sbr.rel (%p1729) target = $region52
        $region51: #{tpu_custom_call.1} parent=47 // pred_region
          %s1732 = sand.u32 %s119, 1
          %s1733 = scalar_lea.sflag [#allocation4], %s1732
          %s1734 = sand.u32 %s119, 1
          %s1735 = smul.addr %s1734, 64
          %s1736 = scalar_lea.vmem [#allocation5], %s1735
          %1737 = dma.done %s1733, 1024
        $region52: #{tpu_custom_call.1} parent=47 // pred_fallthru
          _
      $region48: #{tpu_custom_call.1} parent=5 // pred_fallthru
        _
    $region6: #{tpu_custom_call.1} parent=1 // loop_footer
      %s20 = sadd.s32 1, %s16
    $region7: #{tpu_custom_call.1} parent=1 // loop_footer_branch
      %15 = sbr.rel target = $region3
    $region8: #{tpu_custom_call.1} parent=1 // loop_exit
      _
    %1738 = vsyncpa [#allocation3], 1
    %s1739 = scalar_lea.sflag [#allocation3], 1
    %1740 = vsyncpa %s1739, 1
    %1741 = vsyncpa [#allocation4], 1
    %s1742 = scalar_lea.sflag [#allocation4], 1
    %1743 = vsyncpa %s1742, 1

</llo_original>
